<compile_context>
chip_gen: v6e
topology: v6e:2x2x1
jax: 0.10.0
libtpu: 0.0.40
codegen_flags: <defaults>
</compile_context>

<pallas_src>
import jax
import jax.numpy as jnp
from jax.experimental import pallas as pl
from jax.experimental.pallas import tpu as pltpu

INPUT_FEATURES = 9
HIDDEN_UNITS = 16
OUTPUT_FEATURES = 1
BN_EPS = 1e-5
F_PAD = HIDDEN_UNITS  # input features padded 9 -> 16 so W1 packs uniformly


def _make_kernel(batch, tile_b, num_tiles, compute_dtype):
    """grid=(3, num_tiles): phase 0 = layer1 + BN1 stats;
    phase 1 = recompute layer1, BN1-folded layer2 + BN2 stats;
    phase 2 = recompute layer1+layer2, BN2-folded output layer."""
    needs_mask = (tile_b * num_tiles != batch)
    valid_last = batch - (num_tiles - 1) * tile_b   # valid cols in the last tile
    inv_b = 1.0 / float(batch)
    H = HIDDEN_UNITS

    def kernel(x_ref, wpack_ref, vpack_ref, o_ref,
               sum1_s, ssq1_s, sum2_s, ssq2_s):
        p = pl.program_id(0)   # phase
        t = pl.program_id(1)   # batch tile

        # Packed per-feature vectors: [b1, g1, be1, b2, g2, be2, bo_pad], each (H, 1).
        b1 = vpack_ref[0]
        g1 = vpack_ref[1]
        be1 = vpack_ref[2]
        b2 = vpack_ref[3]
        g2 = vpack_ref[4]
        be2 = vpack_ref[5]
        bo = vpack_ref[6]

        def mm(w, a):
            # MXU matmul; bf16 inputs on request, always f32 accumulation.
            return jnp.dot(w.astype(compute_dtype), a.astype(compute_dtype),
                           preferred_element_type=jnp.float32)

        def fold_bn(sum_ref, ssq_ref, g, be):
            # Fold batch stats + affine into one scale/shift (f32 throughout).
            mean = sum_ref[...] * inv_b
            var = ssq_ref[...] * inv_b - mean * mean          # biased variance
            scale = g * jax.lax.rsqrt(var + BN_EPS)           # rsqrt -> EUP slot
            shift = be - mean * scale
            return scale, shift

        def accum_stats(h, sum_ref, ssq_ref):
            # h is f32 (pre any bf16 downcast).  Only the LAST tile can contain
            # zero-padded batch columns, so only it pays for the mask.
            if needs_mask:
                @pl.when(t == num_tiles - 1)
                def _():
                    col = jax.lax.broadcasted_iota(jnp.int32, (1, tile_b), 1)
                    hm = h * (col < valid_last).astype(jnp.float32)
                    sum_ref[...] += jnp.sum(hm, axis=1, keepdims=True)
                    ssq_ref[...] += jnp.sum(hm * hm, axis=1, keepdims=True)

                @pl.when(t != num_tiles - 1)
                def _():
                    sum_ref[...] += jnp.sum(h, axis=1, keepdims=True)
                    ssq_ref[...] += jnp.sum(h * h, axis=1, keepdims=True)
            else:
                sum_ref[...] += jnp.sum(h, axis=1, keepdims=True)
                ssq_ref[...] += jnp.sum(h * h, axis=1, keepdims=True)

        def layer1():
            # h1 = relu(W1 @ x + b1), recomputed in every phase (VMEM stays O(tile)).
            return jnp.maximum(mm(wpack_ref[0], x_ref[...]) + b1, 0.0)   # (H, TB) f32

        def layer2(h1):
            # BN1 shift folded into the bias (tiny matvec); scale is ONE broadcast mul.
            scale1, shift1 = fold_bn(sum1_s, ssq1_s, g1, be1)
            b2_eff = jnp.dot(wpack_ref[1], shift1,
                             preferred_element_type=jnp.float32) + b2    # (H, 1)
            return jnp.maximum(mm(wpack_ref[1], h1 * scale1) + b2_eff, 0.0)

        @pl.when(jnp.logical_and(p == 0, t == 0))
        def _init():
            sum1_s[...] = jnp.zeros_like(sum1_s)
            ssq1_s[...] = jnp.zeros_like(ssq1_s)
            sum2_s[...] = jnp.zeros_like(sum2_s)
            ssq2_s[...] = jnp.zeros_like(ssq2_s)

        @pl.when(p == 0)
        def _phase0():
            accum_stats(layer1(), sum1_s, ssq1_s)

        @pl.when(p == 1)
        def _phase1():
            accum_stats(layer2(layer1()), sum2_s, ssq2_s)

        @pl.when(p == 2)
        def _phase2():
            h2 = layer2(layer1())
            scale2, shift2 = fold_bn(sum2_s, ssq2_s, g2, be2)
            bo_eff = jnp.dot(wpack_ref[2], shift2,
                             preferred_element_type=jnp.float32) + bo    # (H, 1)
            # TODO(synk): Dropout(p=0.1) training-mode mask omitted (identity).
            out = mm(wpack_ref[2], h2 * scale2) + bo_eff   # (H, TB); only row 0 valid
            o_ref[...] = out[0:OUTPUT_FEATURES, :].astype(o_ref.dtype)   # (1, TB)

    return kernel


def _pack_params(params):
    """Consolidate the 10 tiny parameters into 2 resident operands."""
    (w1, b1, g1, be1, w2, b2, g2, be2, wo, bo) = params
    H = HIDDEN_UNITS
    w1p = jnp.zeros((H, H), jnp.float32).at[:, :INPUT_FEATURES].set(w1)
    wop = jnp.zeros((H, H), jnp.float32).at[:OUTPUT_FEATURES, :].set(wo)
    wpack = jnp.stack([w1p, w2, wop], axis=0)                       # (3, H, H)
    bop = jnp.zeros((H, 1), jnp.float32).at[:OUTPUT_FEATURES, :].set(bo)
    vpack = jnp.stack([b1, g1, be1, b2, g2, be2, bop], axis=0)      # (7, H, 1)
    return wpack, vpack


def market_predictor(x, params, *, tile_b=4096, compute_dtype=jnp.float32):
    """x: (B, INPUT_FEATURES) f32 -> (B, OUTPUT_FEATURES) f32."""
    B = x.shape[0]
    assert x.shape[1] == INPUT_FEATURES
    H = HIDDEN_UNITS

    wpack, vpack = _pack_params(params)

    if B <= tile_b:
        TB, NT = B, 1
    else:
        TB = max(128, 128 * (tile_b // 128))          # lane-aligned batch tile
        NT = int(pl.cdiv(B, TB))
    B_pad = NT * TB

    # Features-minor layout: batch rides the 128-lane axis (lane-dense loads/stores).
    xt = jnp.pad(x.T.astype(compute_dtype),
                 ((0, F_PAD - INPUT_FEATURES), (0, B_pad - B)))      # (16, B_pad)

    x_spec = pl.BlockSpec((F_PAD, TB), lambda p, t: (0, t))          # walk in all phases
    w_spec = pl.BlockSpec(wpack.shape, lambda p, t: (0, 0, 0))       # resident
    v_spec = pl.BlockSpec(vpack.shape, lambda p, t: (0, 0, 0))       # resident
    # Only phase 2 walks output blocks; park at block 0 otherwise (no garbage writeback).
    o_spec = pl.BlockSpec((OUTPUT_FEATURES, TB),
                          lambda p, t: (0, t * jnp.maximum(p - 1, 0)))

    # Generation-aware VMEM budget. Needs are O(tile): x/out double buffers + temps.
    itemsize = jnp.dtype(compute_dtype).itemsize
    est_vmem = (2 * F_PAD * TB * itemsize          # x double buffer
                + 2 * 8 * TB * 4                   # out double buffer (1 row pads to 8)
                + 10 * H * TB * 4                  # h1/h2/temporaries headroom
                + (3 * H * H + 7 * H * 128) * 8)   # resident params (lane-padded)
    try:
        phys = int(getattr(pltpu.get_tpu_info(), "vmem_capacity_bytes", 64 << 20))
    except Exception:
        phys = 64 << 20                            # conservative (v7x per-core VMEM)
    gen_cap = max(phys - (16 << 20), 24 << 20)     # headroom for Mosaic internals
    vmem_limit = int(min(gen_cap, max(est_vmem + (8 << 20), 32 << 20)))

    out = pl.pallas_call(
        _make_kernel(B, TB, NT, compute_dtype),
        out_shape=jax.ShapeDtypeStruct((OUTPUT_FEATURES, B_pad), jnp.float32),
        grid_spec=pltpu.PrefetchScalarGridSpec(
            num_scalar_prefetch=0,
            grid=(3, NT),
            in_specs=[x_spec, w_spec, v_spec],
            out_specs=o_spec,
            scratch_shapes=[pltpu.VMEM((H, 1), jnp.float32)] * 4,   # BN sum/sumsq x2
        ),
        compiler_params=pltpu.CompilerParams(
            # Phases are sequential; the tile axis carries cross-tile BN stat
            # accumulation -> both axes "arbitrary" (exact full-batch BN preserved).
            dimension_semantics=("arbitrary", "arbitrary"),
            vmem_limit_bytes=vmem_limit,
        ),
    )(xt, wpack, vpack)

    # (1, B_pad) and (B, 1) share the same linear layout: reshape, no transpose copy.
    return out[0, :B].reshape(B, OUTPUT_FEATURES)


def init_params(key):
    """PyTorch-style init, stored (out_features, in_features) / (features, 1)."""
    def linear(key, fan_in, fan_out):
        kw, kb = jax.random.split(key)
        bound = 1.0 / jnp.sqrt(float(fan_in))
        w = jax.random.uniform(kw, (fan_out, fan_in), jnp.float32, -bound, bound)
        b = jax.random.uniform(kb, (fan_out, 1), jnp.float32, -bound, bound)
        return w, b

    k1, k2, k3 = jax.random.split(key, 3)
    w1, b1 = linear(k1, INPUT_FEATURES, HIDDEN_UNITS)
    w2, b2 = linear(k2, HIDDEN_UNITS, HIDDEN_UNITS)
    wo, bo = linear(k3, HIDDEN_UNITS, OUTPUT_FEATURES)
    g1 = jnp.ones((HIDDEN_UNITS, 1), jnp.float32)
    be1 = jnp.zeros((HIDDEN_UNITS, 1), jnp.float32)
    g2 = jnp.ones((HIDDEN_UNITS, 1), jnp.float32)
    be2 = jnp.zeros((HIDDEN_UNITS, 1), jnp.float32)
    return (w1, b1, g1, be1, w2, b2, g2, be2, wo, bo)


def _batchnorm_ref(h, gamma, beta):
    mean = jnp.mean(h, axis=0, keepdims=True)
    var = jnp.mean((h - mean) * (h - mean), axis=0, keepdims=True)
    return (h - mean) * jax.lax.rsqrt(var + BN_EPS) * gamma + beta


def reference(x, params):
    (w1, b1, g1, be1, w2, b2, g2, be2, wo, bo) = params
    h = jnp.maximum(x @ w1.T + b1.T, 0.0)
    h = _batchnorm_ref(h, g1.T, be1.T)
    h = jnp.maximum(h @ w2.T + b2.T, 0.0)
    h = _batchnorm_ref(h, g2.T, be2.T)
    return h @ wo.T + bo.T


if __name__ == "__main__":
    key = jax.random.PRNGKey(0)
    kx, kp = jax.random.split(key)
    params = init_params(kp)

    # Small batch (single-tile path).
    x_small = jax.random.normal(kx, (8, INPUT_FEATURES), jnp.float32)
    out_small = jax.block_until_ready(market_predictor(x_small, params))
    assert out_small.shape == (8, OUTPUT_FEATURES)
    assert jnp.allclose(out_small, reference(x_small, params), atol=1e-4, rtol=1e-4)

    # Multi-tile ragged batch (tiling + padding mask + recompute + parked output).
    x_big = jax.random.normal(jax.random.PRNGKey(1), (700, INPUT_FEATURES), jnp.float32)
    out_big = jax.block_until_ready(market_predictor(x_big, params, tile_b=256))
    assert out_big.shape == (700, OUTPUT_FEATURES)
    ref_big = reference(x_big, params)
    assert jnp.allclose(out_big, ref_big, atol=1e-4, rtol=1e-4)

    # bf16 MXU path (v5e-oriented): f32 accumulation, looser tolerance.
    out_bf16 = jax.block_until_ready(
        market_predictor(x_big, params, tile_b=256, compute_dtype=jnp.bfloat16))
    assert out_bf16.shape == (700, OUTPUT_FEATURES)
    assert float(jnp.max(jnp.abs(out_bf16 - ref_big))) < 5e-2

    print("KERNEL_OK")
</pallas_src>

<mosaic_0001>
module attributes {stable_mosaic.version = 11 : i64} {
  func.func @kernel(%arg0: i32, %arg1: i32, %arg2: memref<16x8xf32, #tpu.memory_space<vmem>>, %arg3: memref<3x16x16xf32, #tpu.memory_space<vmem>>, %arg4: memref<7x16x1xf32, #tpu.memory_space<vmem>>, %arg5: memref<1x8xf32, #tpu.memory_space<vmem>>, %arg6: memref<16x1xf32, #tpu.memory_space<vmem>>, %arg7: memref<16x1xf32, #tpu.memory_space<vmem>>, %arg8: memref<16x1xf32, #tpu.memory_space<vmem>>, %arg9: memref<16x1xf32, #tpu.memory_space<vmem>>) attributes {dimension_semantics = [#tpu.dimension_semantics<arbitrary>, #tpu.dimension_semantics<arbitrary>], iteration_bounds = array<i64: 3, 1>, scalar_prefetch = 0 : i64, scratch_operands = 4 : i64, tpu.core_type = #tpu.core_type<tc>, window_params = [{transform_indices = @transform_0, window_bounds = array<i64: 16, 8>}, {pipeline_mode = #tpu.pipeline_mode<synchronous>, transform_indices = @transform_1, window_bounds = array<i64: 3, 16, 16>}, {pipeline_mode = #tpu.pipeline_mode<synchronous>, transform_indices = @transform_2, window_bounds = array<i64: 7, 16, 1>}, {transform_indices = @transform_3, window_bounds = array<i64: 1, 8>}]} {
    %c0 = arith.constant 0 : index
    %c0_0 = arith.constant 0 : index
    %c0_1 = arith.constant 0 : index
    %0 = vector.load %arg4[%c0, %c0_0, %c0_1] : memref<7x16x1xf32, #tpu.memory_space<vmem>>, vector<1x16x1xf32>
    %1 = vector.shape_cast %0 : vector<1x16x1xf32> to vector<16x1xf32>
    %c1 = arith.constant 1 : index
    %c0_2 = arith.constant 0 : index
    %c0_3 = arith.constant 0 : index
    %2 = vector.load %arg4[%c1, %c0_2, %c0_3] : memref<7x16x1xf32, #tpu.memory_space<vmem>>, vector<1x16x1xf32>
    %3 = vector.shape_cast %2 : vector<1x16x1xf32> to vector<16x1xf32>
    %c2 = arith.constant 2 : index
    %c0_4 = arith.constant 0 : index
    %c0_5 = arith.constant 0 : index
    %4 = vector.load %arg4[%c2, %c0_4, %c0_5] : memref<7x16x1xf32, #tpu.memory_space<vmem>>, vector<1x16x1xf32>
    %5 = vector.shape_cast %4 : vector<1x16x1xf32> to vector<16x1xf32>
    %c3 = arith.constant 3 : index
    %c0_6 = arith.constant 0 : index
    %c0_7 = arith.constant 0 : index
    %6 = vector.load %arg4[%c3, %c0_6, %c0_7] : memref<7x16x1xf32, #tpu.memory_space<vmem>>, vector<1x16x1xf32>
    %7 = vector.shape_cast %6 : vector<1x16x1xf32> to vector<16x1xf32>
    %c4 = arith.constant 4 : index
    %c0_8 = arith.constant 0 : index
    %c0_9 = arith.constant 0 : index
    %8 = vector.load %arg4[%c4, %c0_8, %c0_9] : memref<7x16x1xf32, #tpu.memory_space<vmem>>, vector<1x16x1xf32>
    %9 = vector.shape_cast %8 : vector<1x16x1xf32> to vector<16x1xf32>
    %c5 = arith.constant 5 : index
    %c0_10 = arith.constant 0 : index
    %c0_11 = arith.constant 0 : index
    %10 = vector.load %arg4[%c5, %c0_10, %c0_11] : memref<7x16x1xf32, #tpu.memory_space<vmem>>, vector<1x16x1xf32>
    %11 = vector.shape_cast %10 : vector<1x16x1xf32> to vector<16x1xf32>
    %c6 = arith.constant 6 : index
    %c0_12 = arith.constant 0 : index
    %c0_13 = arith.constant 0 : index
    %12 = vector.load %arg4[%c6, %c0_12, %c0_13] : memref<7x16x1xf32, #tpu.memory_space<vmem>>, vector<1x16x1xf32>
    %13 = vector.shape_cast %12 : vector<1x16x1xf32> to vector<16x1xf32>
    %c0_i32 = arith.constant 0 : i32
    %14 = arith.cmpi eq, %arg0, %c0_i32 : i32
    %c0_i32_14 = arith.constant 0 : i32
    %15 = arith.cmpi eq, %arg1, %c0_i32_14 : i32
    %16 = arith.andi %14, %15 : i1
    %17 = arith.extui %16 : i1 to i32
    %c0_i32_15 = arith.constant 0 : i32
    %18 = arith.cmpi ne, %17, %c0_i32_15 : i32
    scf.if %18 {
      %cst = arith.constant 0.000000e+00 : f32
      %28 = vector.broadcast %cst : f32 to vector<16x1xf32>
      %c0_20 = arith.constant 0 : index
      %c0_21 = arith.constant 0 : index
      %29 = vector.load %arg6[%c0_20, %c0_21] : memref<16x1xf32, #tpu.memory_space<vmem>>, vector<16x1xf32>
      tpu.vector_store %arg6[%c0_20, %c0_21], %28 {strides = array<i32>} : memref<16x1xf32, #tpu.memory_space<vmem>>, vector<16x1xf32>,
      %cst_22 = arith.constant 0.000000e+00 : f32
      %30 = vector.broadcast %cst_22 : f32 to vector<16x1xf32>
      %c0_23 = arith.constant 0 : index
      %c0_24 = arith.constant 0 : index
      %31 = vector.load %arg7[%c0_23, %c0_24] : memref<16x1xf32, #tpu.memory_space<vmem>>, vector<16x1xf32>
      tpu.vector_store %arg7[%c0_23, %c0_24], %30 {strides = array<i32>} : memref<16x1xf32, #tpu.memory_space<vmem>>, vector<16x1xf32>,
      %cst_25 = arith.constant 0.000000e+00 : f32
      %32 = vector.broadcast %cst_25 : f32 to vector<16x1xf32>
      %c0_26 = arith.constant 0 : index
      %c0_27 = arith.constant 0 : index
      %33 = vector.load %arg8[%c0_26, %c0_27] : memref<16x1xf32, #tpu.memory_space<vmem>>, vector<16x1xf32>
      tpu.vector_store %arg8[%c0_26, %c0_27], %32 {strides = array<i32>} : memref<16x1xf32, #tpu.memory_space<vmem>>, vector<16x1xf32>,
      %cst_28 = arith.constant 0.000000e+00 : f32
      %34 = vector.broadcast %cst_28 : f32 to vector<16x1xf32>
      %c0_29 = arith.constant 0 : index
      %c0_30 = arith.constant 0 : index
      %35 = vector.load %arg9[%c0_29, %c0_30] : memref<16x1xf32, #tpu.memory_space<vmem>>, vector<16x1xf32>
      tpu.vector_store %arg9[%c0_29, %c0_30], %34 {strides = array<i32>} : memref<16x1xf32, #tpu.memory_space<vmem>>, vector<16x1xf32>,
    } else {
    }
    %c0_i32_16 = arith.constant 0 : i32
    %19 = arith.cmpi eq, %arg0, %c0_i32_16 : i32
    %20 = arith.extui %19 : i1 to i32
    %c0_i32_17 = arith.constant 0 : i32
    %21 = arith.cmpi ne, %20, %c0_i32_17 : i32
    scf.if %21 {
      %c0_20 = arith.constant 0 : index
      %c0_21 = arith.constant 0 : index
      %c0_22 = arith.constant 0 : index
      %28 = vector.load %arg3[%c0_20, %c0_21, %c0_22] : memref<3x16x16xf32, #tpu.memory_space<vmem>>, vector<1x16x16xf32>
      %29 = vector.shape_cast %28 : vector<1x16x16xf32> to vector<16x16xf32>
      %c0_23 = arith.constant 0 : index
      %c0_24 = arith.constant 0 : index
      %30 = vector.load %arg2[%c0_23, %c0_24] : memref<16x8xf32, #tpu.memory_space<vmem>>, vector<16x8xf32>
      %cst = arith.constant dense<0.000000e+00> : vector<16x8xf32>
      %31 = tpu.matmul %29, %30, %cst {dimension_numbers = #tpu.dot_dimension_numbers<[1], [0], [0], [1], [0, 0, 1, 1], [], []>} : vector<16x16xf32>, vector<16x8xf32>, vector<16x8xf32> -> vector<16x8xf32>
      %32 = vector.broadcast %1 : vector<16x1xf32> to vector<16x8xf32>
      %33 = arith.addf %31, %32 : vector<16x8xf32>
      %cst_25 = arith.constant 0.000000e+00 : f32
      %34 = vector.broadcast %cst_25 : f32 to vector<16x8xf32>
      %35 = arith.maximumf %33, %34 : vector<16x8xf32>
      %c0_26 = arith.constant 0 : index
      %c0_27 = arith.constant 0 : index
      %36 = vector.load %arg6[%c0_26, %c0_27] : memref<16x1xf32, #tpu.memory_space<vmem>>, vector<16x1xf32>
      %cst_28 = arith.constant dense<0.000000e+00> : vector<16xf32>
      %37 = vector.multi_reduction <add>, %35, %cst_28 [1] : vector<16x8xf32> to vector<16xf32>
      %38 = vector.shape_cast %37 : vector<16xf32> to vector<16x1xf32>
      %39 = arith.addf %36, %38 : vector<16x1xf32>
      %c0_29 = arith.constant 0 : index
      %c0_30 = arith.constant 0 : index
      %40 = vector.load %arg6[%c0_29, %c0_30] : memref<16x1xf32, #tpu.memory_space<vmem>>, vector<16x1xf32>
      tpu.vector_store %arg6[%c0_29, %c0_30], %39 {strides = array<i32>} : memref<16x1xf32, #tpu.memory_space<vmem>>, vector<16x1xf32>,
      %c0_31 = arith.constant 0 : index
      %c0_32 = arith.constant 0 : index
      %41 = vector.load %arg7[%c0_31, %c0_32] : memref<16x1xf32, #tpu.memory_space<vmem>>, vector<16x1xf32>
      %42 = arith.mulf %35, %35 : vector<16x8xf32>
      %cst_33 = arith.constant dense<0.000000e+00> : vector<16xf32>
      %43 = vector.multi_reduction <add>, %42, %cst_33 [1] : vector<16x8xf32> to vector<16xf32>
      %44 = vector.shape_cast %43 : vector<16xf32> to vector<16x1xf32>
      %45 = arith.addf %41, %44 : vector<16x1xf32>
      %c0_34 = arith.constant 0 : index
      %c0_35 = arith.constant 0 : index
      %46 = vector.load %arg7[%c0_34, %c0_35] : memref<16x1xf32, #tpu.memory_space<vmem>>, vector<16x1xf32>
      tpu.vector_store %arg7[%c0_34, %c0_35], %45 {strides = array<i32>} : memref<16x1xf32, #tpu.memory_space<vmem>>, vector<16x1xf32>,
    } else {
    }
    %c1_i32 = arith.constant 1 : i32
    %22 = arith.cmpi eq, %arg0, %c1_i32 : i32
    %23 = arith.extui %22 : i1 to i32
    %c0_i32_18 = arith.constant 0 : i32
    %24 = arith.cmpi ne, %23, %c0_i32_18 : i32
    scf.if %24 {
      %c0_20 = arith.constant 0 : index
      %c0_21 = arith.constant 0 : index
      %c0_22 = arith.constant 0 : index
      %28 = vector.load %arg3[%c0_20, %c0_21, %c0_22] : memref<3x16x16xf32, #tpu.memory_space<vmem>>, vector<1x16x16xf32>
      %29 = vector.shape_cast %28 : vector<1x16x16xf32> to vector<16x16xf32>
      %c0_23 = arith.constant 0 : index
      %c0_24 = arith.constant 0 : index
      %30 = vector.load %arg2[%c0_23, %c0_24] : memref<16x8xf32, #tpu.memory_space<vmem>>, vector<16x8xf32>
      %cst = arith.constant dense<0.000000e+00> : vector<16x8xf32>
      %31 = tpu.matmul %29, %30, %cst {dimension_numbers = #tpu.dot_dimension_numbers<[1], [0], [0], [1], [0, 0, 1, 1], [], []>} : vector<16x16xf32>, vector<16x8xf32>, vector<16x8xf32> -> vector<16x8xf32>
      %32 = vector.broadcast %1 : vector<16x1xf32> to vector<16x8xf32>
      %33 = arith.addf %31, %32 : vector<16x8xf32>
      %cst_25 = arith.constant 0.000000e+00 : f32
      %34 = vector.broadcast %cst_25 : f32 to vector<16x8xf32>
      %35 = arith.maximumf %33, %34 : vector<16x8xf32>
      %c0_26 = arith.constant 0 : index
      %c0_27 = arith.constant 0 : index
      %36 = vector.load %arg6[%c0_26, %c0_27] : memref<16x1xf32, #tpu.memory_space<vmem>>, vector<16x1xf32>
      %cst_28 = arith.constant 1.250000e-01 : f32
      %37 = vector.broadcast %cst_28 : f32 to vector<16x1xf32>
      %38 = arith.mulf %36, %37 : vector<16x1xf32>
      %c0_29 = arith.constant 0 : index
      %c0_30 = arith.constant 0 : index
      %39 = vector.load %arg7[%c0_29, %c0_30] : memref<16x1xf32, #tpu.memory_space<vmem>>, vector<16x1xf32>
      %cst_31 = arith.constant 1.250000e-01 : f32
      %40 = vector.broadcast %cst_31 : f32 to vector<16x1xf32>
      %41 = arith.mulf %39, %40 : vector<16x1xf32>
      %42 = arith.mulf %38, %38 : vector<16x1xf32>
      %43 = arith.subf %41, %42 : vector<16x1xf32>
      %cst_32 = arith.constant 9.99999974E-6 : f32
      %44 = vector.broadcast %cst_32 : f32 to vector<16x1xf32>
      %45 = arith.addf %43, %44 : vector<16x1xf32>
      %46 = math.rsqrt %45 : vector<16x1xf32>
      %47 = arith.mulf %3, %46 : vector<16x1xf32>
      %48 = arith.mulf %38, %47 : vector<16x1xf32>
      %49 = arith.subf %5, %48 : vector<16x1xf32>
      %c1_33 = arith.constant 1 : index
      %c0_34 = arith.constant 0 : index
      %c0_35 = arith.constant 0 : index
      %50 = vector.load %arg3[%c1_33, %c0_34, %c0_35] : memref<3x16x16xf32, #tpu.memory_space<vmem>>, vector<1x16x16xf32>
      %51 = vector.shape_cast %50 : vector<1x16x16xf32> to vector<16x16xf32>
      %cst_36 = arith.constant dense<0.000000e+00> : vector<16x1xf32>
      %52 = tpu.matmul %51, %49, %cst_36 {dimension_numbers = #tpu.dot_dimension_numbers<[1], [0], [0], [1], [0, 0, 1, 1], [], []>} : vector<16x16xf32>, vector<16x1xf32>, vector<16x1xf32> -> vector<16x1xf32>
      %53 = arith.addf %52, %7 : vector<16x1xf32>
      %c1_37 = arith.constant 1 : index
      %c0_38 = arith.constant 0 : index
      %c0_39 = arith.constant 0 : index
      %54 = vector.load %arg3[%c1_37, %c0_38, %c0_39] : memref<3x16x16xf32, #tpu.memory_space<vmem>>, vector<1x16x16xf32>
      %55 = vector.shape_cast %54 : vector<1x16x16xf32> to vector<16x16xf32>
      %56 = vector.broadcast %47 : vector<16x1xf32> to vector<16x8xf32>
      %57 = arith.mulf %35, %56 : vector<16x8xf32>
      %cst_40 = arith.constant dense<0.000000e+00> : vector<16x8xf32>
      %58 = tpu.matmul %55, %57, %cst_40 {dimension_numbers = #tpu.dot_dimension_numbers<[1], [0], [0], [1], [0, 0, 1, 1], [], []>} : vector<16x16xf32>, vector<16x8xf32>, vector<16x8xf32> -> vector<16x8xf32>
      %59 = vector.broadcast %53 : vector<16x1xf32> to vector<16x8xf32>
      %60 = arith.addf %58, %59 : vector<16x8xf32>
      %cst_41 = arith.constant 0.000000e+00 : f32
      %61 = vector.broadcast %cst_41 : f32 to vector<16x8xf32>
      %62 = arith.maximumf %60, %61 : vector<16x8xf32>
      %c0_42 = arith.constant 0 : index
      %c0_43 = arith.constant 0 : index
      %63 = vector.load %arg8[%c0_42, %c0_43] : memref<16x1xf32, #tpu.memory_space<vmem>>, vector<16x1xf32>
      %cst_44 = arith.constant dense<0.000000e+00> : vector<16xf32>
      %64 = vector.multi_reduction <add>, %62, %cst_44 [1] : vector<16x8xf32> to vector<16xf32>
      %65 = vector.shape_cast %64 : vector<16xf32> to vector<16x1xf32>
      %66 = arith.addf %63, %65 : vector<16x1xf32>
      %c0_45 = arith.constant 0 : index
      %c0_46 = arith.constant 0 : index
      %67 = vector.load %arg8[%c0_45, %c0_46] : memref<16x1xf32, #tpu.memory_space<vmem>>, vector<16x1xf32>
      tpu.vector_store %arg8[%c0_45, %c0_46], %66 {strides = array<i32>} : memref<16x1xf32, #tpu.memory_space<vmem>>, vector<16x1xf32>,
      %c0_47 = arith.constant 0 : index
      %c0_48 = arith.constant 0 : index
      %68 = vector.load %arg9[%c0_47, %c0_48] : memref<16x1xf32, #tpu.memory_space<vmem>>, vector<16x1xf32>
      %69 = arith.mulf %62, %62 : vector<16x8xf32>
      %cst_49 = arith.constant dense<0.000000e+00> : vector<16xf32>
      %70 = vector.multi_reduction <add>, %69, %cst_49 [1] : vector<16x8xf32> to vector<16xf32>
      %71 = vector.shape_cast %70 : vector<16xf32> to vector<16x1xf32>
      %72 = arith.addf %68, %71 : vector<16x1xf32>
      %c0_50 = arith.constant 0 : index
      %c0_51 = arith.constant 0 : index
      %73 = vector.load %arg9[%c0_50, %c0_51] : memref<16x1xf32, #tpu.memory_space<vmem>>, vector<16x1xf32>
      tpu.vector_store %arg9[%c0_50, %c0_51], %72 {strides = array<i32>} : memref<16x1xf32, #tpu.memory_space<vmem>>, vector<16x1xf32>,
    } else {
    }
    %c2_i32 = arith.constant 2 : i32
    %25 = arith.cmpi eq, %arg0, %c2_i32 : i32
    %26 = arith.extui %25 : i1 to i32
    %c0_i32_19 = arith.constant 0 : i32
    %27 = arith.cmpi ne, %26, %c0_i32_19 : i32
    scf.if %27 {
      %c0_20 = arith.constant 0 : index
      %c0_21 = arith.constant 0 : index
      %c0_22 = arith.constant 0 : index
      %28 = vector.load %arg3[%c0_20, %c0_21, %c0_22] : memref<3x16x16xf32, #tpu.memory_space<vmem>>, vector<1x16x16xf32>
      %29 = vector.shape_cast %28 : vector<1x16x16xf32> to vector<16x16xf32>
      %c0_23 = arith.constant 0 : index
      %c0_24 = arith.constant 0 : index
      %30 = vector.load %arg2[%c0_23, %c0_24] : memref<16x8xf32, #tpu.memory_space<vmem>>, vector<16x8xf32>
      %cst = arith.constant dense<0.000000e+00> : vector<16x8xf32>
      %31 = tpu.matmul %29, %30, %cst {dimension_numbers = #tpu.dot_dimension_numbers<[1], [0], [0], [1], [0, 0, 1, 1], [], []>} : vector<16x16xf32>, vector<16x8xf32>, vector<16x8xf32> -> vector<16x8xf32>
      %32 = vector.broadcast %1 : vector<16x1xf32> to vector<16x8xf32>
      %33 = arith.addf %31, %32 : vector<16x8xf32>
      %cst_25 = arith.constant 0.000000e+00 : f32
      %34 = vector.broadcast %cst_25 : f32 to vector<16x8xf32>
      %35 = arith.maximumf %33, %34 : vector<16x8xf32>
      %c0_26 = arith.constant 0 : index
      %c0_27 = arith.constant 0 : index
      %36 = vector.load %arg6[%c0_26, %c0_27] : memref<16x1xf32, #tpu.memory_space<vmem>>, vector<16x1xf32>
      %cst_28 = arith.constant 1.250000e-01 : f32
      %37 = vector.broadcast %cst_28 : f32 to vector<16x1xf32>
      %38 = arith.mulf %36, %37 : vector<16x1xf32>
      %c0_29 = arith.constant 0 : index
      %c0_30 = arith.constant 0 : index
      %39 = vector.load %arg7[%c0_29, %c0_30] : memref<16x1xf32, #tpu.memory_space<vmem>>, vector<16x1xf32>
      %cst_31 = arith.constant 1.250000e-01 : f32
      %40 = vector.broadcast %cst_31 : f32 to vector<16x1xf32>
      %41 = arith.mulf %39, %40 : vector<16x1xf32>
      %42 = arith.mulf %38, %38 : vector<16x1xf32>
      %43 = arith.subf %41, %42 : vector<16x1xf32>
      %cst_32 = arith.constant 9.99999974E-6 : f32
      %44 = vector.broadcast %cst_32 : f32 to vector<16x1xf32>
      %45 = arith.addf %43, %44 : vector<16x1xf32>
      %46 = math.rsqrt %45 : vector<16x1xf32>
      %47 = arith.mulf %3, %46 : vector<16x1xf32>
      %48 = arith.mulf %38, %47 : vector<16x1xf32>
      %49 = arith.subf %5, %48 : vector<16x1xf32>
      %c1_33 = arith.constant 1 : index
      %c0_34 = arith.constant 0 : index
      %c0_35 = arith.constant 0 : index
      %50 = vector.load %arg3[%c1_33, %c0_34, %c0_35] : memref<3x16x16xf32, #tpu.memory_space<vmem>>, vector<1x16x16xf32>
      %51 = vector.shape_cast %50 : vector<1x16x16xf32> to vector<16x16xf32>
      %cst_36 = arith.constant dense<0.000000e+00> : vector<16x1xf32>
      %52 = tpu.matmul %51, %49, %cst_36 {dimension_numbers = #tpu.dot_dimension_numbers<[1], [0], [0], [1], [0, 0, 1, 1], [], []>} : vector<16x16xf32>, vector<16x1xf32>, vector<16x1xf32> -> vector<16x1xf32>
      %53 = arith.addf %52, %7 : vector<16x1xf32>
      %c1_37 = arith.constant 1 : index
      %c0_38 = arith.constant 0 : index
      %c0_39 = arith.constant 0 : index
      %54 = vector.load %arg3[%c1_37, %c0_38, %c0_39] : memref<3x16x16xf32, #tpu.memory_space<vmem>>, vector<1x16x16xf32>
      %55 = vector.shape_cast %54 : vector<1x16x16xf32> to vector<16x16xf32>
      %56 = vector.broadcast %47 : vector<16x1xf32> to vector<16x8xf32>
      %57 = arith.mulf %35, %56 : vector<16x8xf32>
      %cst_40 = arith.constant dense<0.000000e+00> : vector<16x8xf32>
      %58 = tpu.matmul %55, %57, %cst_40 {dimension_numbers = #tpu.dot_dimension_numbers<[1], [0], [0], [1], [0, 0, 1, 1], [], []>} : vector<16x16xf32>, vector<16x8xf32>, vector<16x8xf32> -> vector<16x8xf32>
      %59 = vector.broadcast %53 : vector<16x1xf32> to vector<16x8xf32>
      %60 = arith.addf %58, %59 : vector<16x8xf32>
      %cst_41 = arith.constant 0.000000e+00 : f32
      %61 = vector.broadcast %cst_41 : f32 to vector<16x8xf32>
      %62 = arith.maximumf %60, %61 : vector<16x8xf32>
      %c0_42 = arith.constant 0 : index
      %c0_43 = arith.constant 0 : index
      %63 = vector.load %arg8[%c0_42, %c0_43] : memref<16x1xf32, #tpu.memory_space<vmem>>, vector<16x1xf32>
      %cst_44 = arith.constant 1.250000e-01 : f32
      %64 = vector.broadcast %cst_44 : f32 to vector<16x1xf32>
      %65 = arith.mulf %63, %64 : vector<16x1xf32>
      %c0_45 = arith.constant 0 : index
      %c0_46 = arith.constant 0 : index
      %66 = vector.load %arg9[%c0_45, %c0_46] : memref<16x1xf32, #tpu.memory_space<vmem>>, vector<16x1xf32>
      %cst_47 = arith.constant 1.250000e-01 : f32
      %67 = vector.broadcast %cst_47 : f32 to vector<16x1xf32>
      %68 = arith.mulf %66, %67 : vector<16x1xf32>
      %69 = arith.mulf %65, %65 : vector<16x1xf32>
      %70 = arith.subf %68, %69 : vector<16x1xf32>
      %cst_48 = arith.constant 9.99999974E-6 : f32
      %71 = vector.broadcast %cst_48 : f32 to vector<16x1xf32>
      %72 = arith.addf %70, %71 : vector<16x1xf32>
      %73 = math.rsqrt %72 : vector<16x1xf32>
      %74 = arith.mulf %9, %73 : vector<16x1xf32>
      %75 = arith.mulf %65, %74 : vector<16x1xf32>
      %76 = arith.subf %11, %75 : vector<16x1xf32>
      %c2_49 = arith.constant 2 : index
      %c0_50 = arith.constant 0 : index
      %c0_51 = arith.constant 0 : index
      %77 = vector.load %arg3[%c2_49, %c0_50, %c0_51] : memref<3x16x16xf32, #tpu.memory_space<vmem>>, vector<1x16x16xf32>
      %78 = vector.shape_cast %77 : vector<1x16x16xf32> to vector<16x16xf32>
      %cst_52 = arith.constant dense<0.000000e+00> : vector<16x1xf32>
      %79 = tpu.matmul %78, %76, %cst_52 {dimension_numbers = #tpu.dot_dimension_numbers<[1], [0], [0], [1], [0, 0, 1, 1], [], []>} : vector<16x16xf32>, vector<16x1xf32>, vector<16x1xf32> -> vector<16x1xf32>
      %80 = arith.addf %79, %13 : vector<16x1xf32>
      %c2_53 = arith.constant 2 : index
      %c0_54 = arith.constant 0 : index
      %c0_55 = arith.constant 0 : index
      %81 = vector.load %arg3[%c2_53, %c0_54, %c0_55] : memref<3x16x16xf32, #tpu.memory_space<vmem>>, vector<1x16x16xf32>
      %82 = vector.shape_cast %81 : vector<1x16x16xf32> to vector<16x16xf32>
      %83 = vector.broadcast %74 : vector<16x1xf32> to vector<16x8xf32>
      %84 = arith.mulf %62, %83 : vector<16x8xf32>
      %cst_56 = arith.constant dense<0.000000e+00> : vector<16x8xf32>
      %85 = tpu.matmul %82, %84, %cst_56 {dimension_numbers = #tpu.dot_dimension_numbers<[1], [0], [0], [1], [0, 0, 1, 1], [], []>} : vector<16x16xf32>, vector<16x8xf32>, vector<16x8xf32> -> vector<16x8xf32>
      %86 = vector.broadcast %80 : vector<16x1xf32> to vector<16x8xf32>
      %87 = arith.addf %85, %86 : vector<16x8xf32>
      %88 = vector.extract_strided_slice %87 {offsets = [0, 0], sizes = [1, 8], strides = [1, 1]} : vector<16x8xf32> to vector<1x8xf32>
      %c0_57 = arith.constant 0 : index
      %c0_58 = arith.constant 0 : index
      %89 = vector.load %arg5[%c0_57, %c0_58] : memref<1x8xf32, #tpu.memory_space<vmem>>, vector<1x8xf32>
      tpu.vector_store %arg5[%c0_57, %c0_58], %88 {strides = array<i32>} : memref<1x8xf32, #tpu.memory_space<vmem>>, vector<1x8xf32>,
    } else {
    }
    return
  }
  func.func @transform_0(%arg0: i32, %arg1: i32) -> (i32, i32) {
    %c0_i32 = arith.constant 0 : i32
    %c0_i32_0 = arith.constant 0 : i32
    return %c0_i32, %arg1 : i32, i32
  }
  func.func @transform_1(%arg0: i32, %arg1: i32) -> (i32, i32, i32) {
    %c0_i32 = arith.constant 0 : i32
    %c0_i32_0 = arith.constant 0 : i32
    %c0_i32_1 = arith.constant 0 : i32
    %c0_i32_2 = arith.constant 0 : i32
    return %c0_i32, %c0_i32_0, %c0_i32_1 : i32, i32, i32
  }
  func.func @transform_2(%arg0: i32, %arg1: i32) -> (i32, i32, i32) {
    %c0_i32 = arith.constant 0 : i32
    %c0_i32_0 = arith.constant 0 : i32
    %c0_i32_1 = arith.constant 0 : i32
    %c0_i32_2 = arith.constant 0 : i32
    return %c0_i32, %c0_i32_0, %c0_i32_1 : i32, i32, i32
  }
  func.func @transform_3(%arg0: i32, %arg1: i32) -> (i32, i32) {
    %c1_i32 = arith.constant 1 : i32
    %0 = arith.subi %arg0, %c1_i32 : i32
    %c0_i32 = arith.constant 0 : i32
    %1 = arith.maxsi %0, %c0_i32 : i32
    %2 = arith.muli %arg1, %1 : i32
    %c0_i32_0 = arith.constant 0 : i32
    %c0_i32_1 = arith.constant 0 : i32
    return %c0_i32_0, %2 : i32, i32
  }
}

</mosaic_0001>

<llo_original>
// kernel: tpu_custom_call.1
$region0: #{tpu_custom_call.1}
  #allocation0 [shape = 'u32[]', space=smem, size = 0x4, offset = 0x4, fixed_abs, tag = 'smem constant byte address 0x4 - core index']
  #allocation1 [shape = 'u32[144,128]{1,0:T(1,128)}', space=vmem, size = 0x12000, scoped, tag = 'internal scratch']
  #allocation2 [shape = 'f32[16,1]{1,0:T(8,128)}', space=vmem, size = 0x2000, scoped, tag = 'scratch operand']
  #allocation3 [shape = 'f32[16,1]{1,0:T(8,128)}', space=vmem, size = 0x2000, scoped, tag = 'scratch operand']
  #allocation4 [shape = 'f32[16,1]{1,0:T(8,128)}', space=vmem, size = 0x2000, scoped, tag = 'scratch operand']
  #allocation5 [shape = 'f32[16,1]{1,0:T(8,128)}', space=vmem, size = 0x2000, scoped, tag = 'scratch operand']
  %s0 = inlined_call_operand.vmem [shape: f32[16,8], index: 0, kind: input, shape index: {}]
  %s1 = inlined_call_operand.vmem [shape: f32[3,16,16], index: 1, kind: input, shape index: {}]
  %s2 = inlined_call_operand.vmem [shape: f32[7,16,1], index: 2, kind: input, shape index: {}]
  %s3 = inlined_call_operand.hbm [shape: f32[1,8], index: 3, kind: output, shape index: {}]
  %s4 = sld [smem:[#allocation0]]
  $region61: #{tpu_custom_call.1} parent=0
    _
  %s6 = ssub.s32 1, %s4
  %s7 = scalar_select 0, %s6, %s4
  $region1: #{tpu_custom_call.1} parent=0
    #allocation6 [shape = 'u8[1024]{0}', space=vmem, size = 0x400, scoped, tag = 'output window, operand 0']
    #allocation7 [shape = 's32[2]{0}', space=sflag, size = 0x8, scoped, tag = 'scoped memory for tpu_custom_call.1']
    %8 = vsyncpa [#allocation7], 0
    %s9 = scalar_lea.sflag [#allocation7], 1
    %10 = vsyncpa %s9, 0
    loop: start=0, step=1, limit=5
    $region2: #{tpu_custom_call.1} parent=1 // loop_pre_header
      _
    $region3: #{tpu_custom_call.1} parent=1 // loop_header
      %s12 = sphi 0, %s16
      %p13 = scmp.ge.s32.totalorder %s12, 5
      %s19 = sphi 0, %s31
      %s20 = sphi 0, %s27
      %s21 = sphi 0, %s19
      %s22 = sphi 0, %s20
      %s23 = sphi 0, %s21
      %s24 = sphi 0, %s22
      %s34 = sphi 0, %s36
      %s37 = sphi 0, %s34
      %s38 = sphi 0, %s37
      %s54 = sphi 0, %s38
      %s58 = sphi 0, %s58
      %s60 = sphi 0, %s58
      %s61 = sphi 0, %s60
      %s75 = sphi 0, %s61
      %s79 = sphi 0, %s79
      %s81 = sphi 0, %s79
      %s82 = sphi 0, %s81
      %s96 = sphi 0, %s82
      %s110 = sphi 0, %s112
      %s113 = sphi 0, %s110
      %s114 = sphi 0, %s113
      %s130 = sphi 0, %s114
    $region4: #{tpu_custom_call.1} parent=1 // loop_header_branch
      %15 = sbr.rel (%p13) target = $region8
    $region5: #{tpu_custom_call.1} parent=1 // loop_body
      %s17 = ssub.s32 %s12, 1
      %s18 = ssub.s32 %s12, 2
      %s25 = sadd.s32 1, %s20
      %p26 = scmp.ge.s32.totalorder %s25, 1
      %s27 = scalar_select %p26, 0, %s25
      %s28 = sadd.s32 1, %s19
      %s29 = scalar_select %p26, %s28, %s19
      %p30 = scmp.ge.s32.totalorder %s29, 3
      %s31 = scalar_select %p30, 0, %s29
      %s32 = ssub.s32 %s20, %s27
      %p33 = scmp.eq.s32.totalorder %s32, 0
      %s35 = sadd.s32 %s34, 1
      %s36 = scalar_select %p33, %s34, %s35
      %p39 = pneg %p33
      %p40 = scmp.eq.s32.totalorder %s12, 2
      %p41 = por %p39, %p40
      %p42 = scmp.ne.s32.totalorder %s34, %s37
      %p43 = scmp.eq.s32.totalorder %s12, 0
      %p44 = por %p42, %p43
      %p45 = scmp.ne.s32.totalorder %s34, %s37
      %p46 = scmp.eq.s32.totalorder %s17, 2
      %p47 = por %p45, %p46
      %p48 = scmp.ne.s32.totalorder %s37, %s38
      %p49 = scmp.eq.s32.totalorder %s17, 0
      %p50 = por %p48, %p49
      %p51 = scmp.ne.s32.totalorder %s37, %s38
      %p52 = scmp.eq.s32.totalorder %s18, 2
      %p53 = por %p51, %p52
      %p55 = scmp.ne.s32.totalorder %s38, %s54
      %p56 = scmp.eq.s32.totalorder %s18, 0
      %p57 = por %p55, %p56
      %s59 = sadd.s32 %s58, 1
      %p62 = scmp.eq.s32.totalorder %s12, 2
      %p63 = scmp.ne.s32.totalorder %s58, %s60
      %p64 = scmp.eq.s32.totalorder %s12, 0
      %p65 = por %p63, %p64
      %p66 = scmp.ne.s32.totalorder %s58, %s60
      %p67 = scmp.eq.s32.totalorder %s17, 2
      %p68 = por %p66, %p67
      %p69 = scmp.ne.s32.totalorder %s60, %s61
      %p70 = scmp.eq.s32.totalorder %s17, 0
      %p71 = por %p69, %p70
      %p72 = scmp.ne.s32.totalorder %s60, %s61
      %p73 = scmp.eq.s32.totalorder %s18, 2
      %p74 = por %p72, %p73
      %p76 = scmp.ne.s32.totalorder %s61, %s75
      %p77 = scmp.eq.s32.totalorder %s18, 0
      %p78 = por %p76, %p77
      %s80 = sadd.s32 %s79, 1
      %p83 = scmp.eq.s32.totalorder %s12, 2
      %p84 = scmp.ne.s32.totalorder %s79, %s81
      %p85 = scmp.eq.s32.totalorder %s12, 0
      %p86 = por %p84, %p85
      %p87 = scmp.ne.s32.totalorder %s79, %s81
      %p88 = scmp.eq.s32.totalorder %s17, 2
      %p89 = por %p87, %p88
      %p90 = scmp.ne.s32.totalorder %s81, %s82
      %p91 = scmp.eq.s32.totalorder %s17, 0
      %p92 = por %p90, %p91
      %p93 = scmp.ne.s32.totalorder %s81, %s82
      %p94 = scmp.eq.s32.totalorder %s18, 2
      %p95 = por %p93, %p94
      %p97 = scmp.ne.s32.totalorder %s82, %s96
      %p98 = scmp.eq.s32.totalorder %s18, 0
      %p99 = por %p97, %p98
      %s100 = ssub.s32 %s19, 1
      %p101 = scmp.gt.s32.totalorder %s100, 0
      %s102 = scalar_select %p101, %s100, 0
      %s103 = smul.u32 %s20, %s102
      %s104 = ssub.s32 %s31, 1
      %p105 = scmp.gt.s32.totalorder %s104, 0
      %s106 = scalar_select %p105, %s104, 0
      %s107 = smul.u32 %s27, %s106
      %s108 = ssub.s32 %s103, %s107
      %p109 = scmp.eq.s32.totalorder %s108, 0
      %s111 = sadd.s32 %s110, 1
      %s112 = scalar_select %p109, %s110, %s111
      %p115 = pneg %p109
      %p116 = scmp.eq.s32.totalorder %s12, 2
      %p117 = por %p115, %p116
      %p118 = scmp.ne.s32.totalorder %s110, %s113
      %p119 = scmp.eq.s32.totalorder %s12, 0
      %p120 = por %p118, %p119
      %p121 = scmp.ne.s32.totalorder %s110, %s113
      %p122 = scmp.eq.s32.totalorder %s17, 2
      %p123 = por %p121, %p122
      %p124 = scmp.ne.s32.totalorder %s113, %s114
      %p125 = scmp.eq.s32.totalorder %s17, 0
      %p126 = por %p124, %p125
      %p127 = scmp.ne.s32.totalorder %s113, %s114
      %p128 = scmp.eq.s32.totalorder %s18, 2
      %p129 = por %p127, %p128
      %p131 = scmp.ne.s32.totalorder %s114, %s130
      %p132 = scmp.eq.s32.totalorder %s18, 0
      %p133 = por %p131, %p132
      %p134 = scmp.le.s32.totalorder 1, %s12
      %p135 = scmp.lt.s32.totalorder %s12, 4
      %p136 = pnand %p134, %p135
      %p137 = pneg %p136
      // Predicated region
      $region9: #{tpu_custom_call.1} parent=5 // pred_check
        _
      $region10: #{tpu_custom_call.1} parent=5 // pred_check_branch
        %139 = sbr.rel (%p136) target = $region12
      $region11: #{tpu_custom_call.1} parent=5 // pred_region
        %s140 = ssub.s32 %s12, 1
        // Predicated region
        $region13: #{tpu_custom_call.1} parent=11 // pred_check
          %p141 = pneg %p50
        $region14: #{tpu_custom_call.1} parent=11 // pred_check_branch
          %143 = sbr.rel (%p141) target = $region16
        $region15: #{tpu_custom_call.1} parent=11 // pred_region
          %p144 = scmp.lt.s32.totalorder %s22, 0
          %s145 = scalar_select %p144, %s22, 0
          %s146 = smul.addr %s145, 8
          %s147 = scalar_lea.vmem %s0, %s146
        $region16: #{tpu_custom_call.1} parent=11 // pred_fallthru
          _
        // Predicated region
        $region17: #{tpu_custom_call.1} parent=11 // pred_check
          %p148 = pneg %p71
        $region18: #{tpu_custom_call.1} parent=11 // pred_check_branch
          %150 = sbr.rel (%p148) target = $region20
        $region19: #{tpu_custom_call.1} parent=11 // pred_region
          _
        $region20: #{tpu_custom_call.1} parent=11 // pred_fallthru
          _
        // Predicated region
        $region21: #{tpu_custom_call.1} parent=11 // pred_check
          %p151 = pneg %p92
        $region22: #{tpu_custom_call.1} parent=11 // pred_check_branch
          %153 = sbr.rel (%p151) target = $region24
        $region23: #{tpu_custom_call.1} parent=11 // pred_region
          _
        $region24: #{tpu_custom_call.1} parent=11 // pred_fallthru
          _
      $region12: #{tpu_custom_call.1} parent=5 // pred_fallthru
        _
      %p154 = scmp.lt.s32.totalorder %s12, 3
      // Predicated region
      $region25: #{tpu_custom_call.1} parent=5 // pred_check
        %p155 = pneg %p154
      $region26: #{tpu_custom_call.1} parent=5 // pred_check_branch
        %157 = sbr.rel (%p155) target = $region28
      $region27: #{tpu_custom_call.1} parent=5 // pred_region
        _
      $region28: #{tpu_custom_call.1} parent=5 // pred_fallthru
        _
      %p158 = scmp.le.s32.totalorder 1, %s12
      %p159 = scmp.lt.s32.totalorder %s12, 4
      %p160 = pnand %p158, %p159
      %p161 = pneg %p160
      // Predicated region
      $region29: #{tpu_custom_call.1} parent=5 // pred_check
        _
      $region30: #{tpu_custom_call.1} parent=5 // pred_check_branch
        %163 = sbr.rel (%p160) target = $region32
      $region31: #{tpu_custom_call.1} parent=5 // pred_region
        %s164 = ssub.s32 %s12, 1
        %p165 = scmp.lt.s32.totalorder %s22, 0
        %s166 = scalar_select %p165, %s22, 0
        %s167 = smul.addr %s166, 8
        %s168 = scalar_lea.vmem %s0, %s167
        %p169 = pneg %p50
        %p170 = pneg %p47
        %p171 = pneg %p71
        %p172 = pneg %p68
        %p173 = pneg %p92
        %p174 = pneg %p89
        %p175 = pneg %p126
        %p176 = pneg %p123
        %s177 = sand.u32 %s113, 1
        %s178 = scalar_lea.sflag [#allocation7], %s177
        %s179 = sand.u32 %s113, 1
        %s180 = scalar_lea.vmem [#allocation6], %s179
        %p181 = scmp.lt.s32.totalorder %s22, 0
        %s182 = scalar_select %p181, %s22, 0
        %s183 = smul.addr %s182, 8
        %s184 = scalar_lea.vmem %s0, %s183
        %s185 = ssub.s32 %s21, 1
        %p186 = scmp.gt.s32.totalorder %s185, 0
        %s187 = scalar_select %p186, %s185, 0
        %s188 = smul.u32 %s22, %s187
        %v189 = vld [vmem:[%s2] sm:$0xff]
        %v190 = vld [vmem:[%s2 + $0x8] sm:$0xff]
        %s191 = scalar_lea.vmem %s2, 16
        %v192 = vld [vmem:[%s191] sm:$0xff]
        %v193 = vld [vmem:[%s191 + $0x8] sm:$0xff]
        %s194 = scalar_lea.vmem %s2, 32
        %v195 = vld [vmem:[%s194] sm:$0xff]
        %v196 = vld [vmem:[%s194 + $0x8] sm:$0xff]
        %s197 = scalar_lea.vmem %s2, 48
        %v198 = vld [vmem:[%s197] sm:$0xff]
        %v199 = vld [vmem:[%s197 + $0x8] sm:$0xff]
        %s200 = scalar_lea.vmem %s2, 64
        %v201 = vld [vmem:[%s200] sm:$0xff]
        %v202 = vld [vmem:[%s200 + $0x8] sm:$0xff]
        %s203 = scalar_lea.vmem %s2, 80
        %v204 = vld [vmem:[%s203] sm:$0xff]
        %v205 = vld [vmem:[%s203 + $0x8] sm:$0xff]
        %s206 = scalar_lea.vmem %s2, 96
        %v207 = vld [vmem:[%s206] sm:$0xff]
        %v208 = vld [vmem:[%s206 + $0x8] sm:$0xff]
        %p209 = scmp.eq.s32.totalorder %s21, 0
        %p210 = scmp.eq.s32.totalorder %s22, 0
        %p211 = pnand %p209, %p210
        %p212 = pneg %p211
        // Predicated region
        $region33: #{tpu_custom_call.1} parent=31 // pred_check
          _
        $region34: #{tpu_custom_call.1} parent=31 // pred_check_branch
          %214 = sbr.rel (%p211) target = $region36
        $region35: #{tpu_custom_call.1} parent=31 // pred_region
          %vm215 = vcmask 7168
          %216 = vst.msk [vmem:[#allocation2] sm:$0xff] %vm215, 0.0
          %217 = vst.msk [vmem:[#allocation2 + $0x8] sm:$0xff] %vm215, 0.0
          %218 = vst.msk [vmem:[#allocation3] sm:$0xff] %vm215, 0.0
          %219 = vst.msk [vmem:[#allocation3 + $0x8] sm:$0xff] %vm215, 0.0
          %220 = vst.msk [vmem:[#allocation4] sm:$0xff] %vm215, 0.0
          %221 = vst.msk [vmem:[#allocation4 + $0x8] sm:$0xff] %vm215, 0.0
          %222 = vst.msk [vmem:[#allocation5] sm:$0xff] %vm215, 0.0
          %223 = vst.msk [vmem:[#allocation5 + $0x8] sm:$0xff] %vm215, 0.0
        $region36: #{tpu_custom_call.1} parent=31 // pred_fallthru
          _
        // Predicated region
        $region37: #{tpu_custom_call.1} parent=31 // pred_check
          %p224 = pneg %p209
        $region38: #{tpu_custom_call.1} parent=31 // pred_check_branch
          %226 = sbr.rel (%p224) target = $region40
        $region39: #{tpu_custom_call.1} parent=31 // pred_region
          %v227 = vld [vmem:[%s1] sm:$0xff]
          %v228 = vld [vmem:[%s1 + $0x8] sm:$0xff]
          %v229 = vld [vmem:[%s184] sm:$0xff]
          %v230 = vld [vmem:[%s184 + $0x8] sm:$0xff]
          %232 = vset.pattern.permute.xlu0 0
          %233 = vperm.xlu0 %232, %v189
          %v234 = vpop.permute.xlu0 %233
          %237 = vset.pattern.permute.xlu0 0
          %238 = vperm.xlu0 %237, %v190
          %v239 = vpop.permute.xlu0 %238
          %vm241 = vcmask 130048
          %v243 = vsel %vm241, %v227, 0
          %v246 = vsel %vm241, %v228, 0
          %248 = vmatprep.subr.mxu0 0.0
          %249 = vmatpush1.msra.mxu0 0.0
          %250 = vmatprep.subr.mxu0 0.0
          %251 = vmatpush1.msra.mxu0 0.0
          %252 = vmatprep.subr.mxu0 0.0
          %253 = vmatpush1.msra.mxu0 0.0
          %254 = vmatprep.subr.mxu0 0.0
          %255 = vmatpush1.msra.mxu0 0.0
          %256 = vmatprep.subr.mxu0 0.0
          %257 = vmatpush1.msra.mxu0 0.0
          %258 = vmatprep.subr.mxu0 0.0
          %259 = vmatpush1.msra.mxu0 0.0
          %260 = vmatprep.subr.mxu0 0.0
          %261 = vmatpush1.msra.mxu0 0.0
          %262 = vmatprep.subr.mxu0 0.0
          %263 = vmatpush1.msra.mxu0 0.0
          %264 = vmatprep.subr.mxu0 0.0
          %265 = vmatpush1.msra.mxu0 0.0
          %266 = vmatprep.subr.mxu0 0.0
          %267 = vmatpush1.msra.mxu0 0.0
          %268 = vmatprep.subr.mxu0 0.0
          %269 = vmatpush1.msra.mxu0 0.0
          %270 = vmatprep.subr.mxu0 0.0
          %271 = vmatpush1.msra.mxu0 0.0
          %272 = vmatprep.subr.mxu0 0.0
          %273 = vmatpush1.msra.mxu0 0.0
          %274 = vmatprep.subr.mxu0 0.0
          %275 = vmatpush1.msra.mxu0 0.0
          %276 = vmatprep.subr.mxu0 0.0
          %277 = vmatpush1.msra.mxu0 %v230
          %278 = vmatprep.subr.mxu0 0.0
          %279 = vmatpush1.msra.mxu0 %v229
          %280 = vmatprep.subr.mxu0 0.0
          %281 = vmatpush2.msra.mxu0 0.0
          %282 = vmatprep.subr.mxu0 0.0
          %283 = vmatpush2.msra.mxu0 0.0
          %284 = vmatprep.subr.mxu0 0.0
          %285 = vmatpush2.msra.mxu0 0.0
          %286 = vmatprep.subr.mxu0 0.0
          %287 = vmatpush2.msra.mxu0 0.0
          %288 = vmatprep.subr.mxu0 0.0
          %289 = vmatpush2.msra.mxu0 0.0
          %290 = vmatprep.subr.mxu0 0.0
          %291 = vmatpush2.msra.mxu0 0.0
          %292 = vmatprep.subr.mxu0 0.0
          %293 = vmatpush2.msra.mxu0 0.0
          %294 = vmatprep.subr.mxu0 0.0
          %295 = vmatpush2.msra.mxu0 0.0
          %296 = vmatprep.subr.mxu0 0.0
          %297 = vmatpush2.msra.mxu0 0.0
          %298 = vmatprep.subr.mxu0 0.0
          %299 = vmatpush2.msra.mxu0 0.0
          %300 = vmatprep.subr.mxu0 0.0
          %301 = vmatpush2.msra.mxu0 0.0
          %302 = vmatprep.subr.mxu0 0.0
          %303 = vmatpush2.msra.mxu0 0.0
          %304 = vmatprep.subr.mxu0 0.0
          %305 = vmatpush2.msra.mxu0 0.0
          %306 = vmatprep.subr.mxu0 0.0
          %307 = vmatpush2.msra.mxu0 0.0
          %308 = vmatprep.subr.mxu0 0.0
          %309 = vmatpush2.msra.mxu0 0.0
          %310 = vmatprep.subr.mxu0 0.0
          %311 = vmatpush2.msra.mxu0 0.0
          %312 = vmatprep.mubr.f32.mxu0 0.0
          %313 = vmatmul.mubr.f32.gmra.mxu0 %v243
          %v314 = vpop.f32.mrf.mxu0
          %v315 = vadd.f32 %v234, %v314
          %v316 = vpop.f32.mrf.mxu0
          %317 = vmatprep.mubr.f32.mxu0 0.0
          %318 = vmatmul.mubr.f32.gmra.mxu0 %v246
          %v319 = vpop.f32.mrf.mxu0
          %v320 = vadd.f32 %v239, %v319
          %v321 = vpop.f32.mrf.mxu0
          %322 = vdwg.mxu0
          %v323 = vmax.f32 %v315, 0.0
          %v324 = vmax.f32 %v320, 0.0
          %v325 = vld [vmem:[#allocation2] sm:$0xff]
          %v326 = vld [vmem:[#allocation2 + $0x8] sm:$0xff]
          %vm327 = vcmask 64512
          %v328 = vsel %vm327, %v323, 0.0
          %329 = vadd.xlane.f32.xlu0 %v328
          %v330 = vpop.xlane.xlu0 %329
          %v331 = vsel %vm327, %v324, 0.0
          %332 = vadd.xlane.f32.xlu0 %v331
          %v333 = vpop.xlane.xlu0 %332
          %v334 = vadd.f32 %v325, %v330
          %v335 = vadd.f32 %v326, %v333
          %vm336 = vcmask 7168
          %337 = vst.msk [vmem:[#allocation2] sm:$0xff] %vm336, %v334
          %338 = vst.msk [vmem:[#allocation2 + $0x8] sm:$0xff] %vm336, %v335
          %v339 = vld [vmem:[#allocation3] sm:$0xff]
          %v340 = vld [vmem:[#allocation3 + $0x8] sm:$0xff]
          %v341 = vmul.f32 %v323, %v323
          %v342 = vmul.f32 %v324, %v324
          %v343 = vsel %vm327, %v341, 0.0
          %344 = vadd.xlane.f32.xlu0 %v343
          %v345 = vpop.xlane.xlu0 %344
          %v346 = vsel %vm327, %v342, 0.0
          %347 = vadd.xlane.f32.xlu0 %v346
          %v348 = vpop.xlane.xlu0 %347
          %v349 = vadd.f32 %v339, %v345
          %v350 = vadd.f32 %v340, %v348
          %351 = vst.msk [vmem:[#allocation3] sm:$0xff] %vm336, %v349
          %352 = vst.msk [vmem:[#allocation3 + $0x8] sm:$0xff] %vm336, %v350
        $region40: #{tpu_custom_call.1} parent=31 // pred_fallthru
          _
        %p353 = scmp.eq.s32.totalorder %s21, 1
        // Predicated region
        $region41: #{tpu_custom_call.1} parent=31 // pred_check
          %p354 = pneg %p353
        $region42: #{tpu_custom_call.1} parent=31 // pred_check_branch
          %356 = sbr.rel (%p354) target = $region44
        $region43: #{tpu_custom_call.1} parent=31 // pred_region
          %v357 = vld [vmem:[%s1] sm:$0xff]
          %v358 = vld [vmem:[%s1 + $0x8] sm:$0xff]
          %v359 = vld [vmem:[%s184] sm:$0xff]
          %v360 = vld [vmem:[%s184 + $0x8] sm:$0xff]
          %362 = vset.pattern.permute.xlu0 0
          %363 = vperm.xlu0 %362, %v189
          %v364 = vpop.permute.xlu0 %363
          %367 = vset.pattern.permute.xlu0 0
          %368 = vperm.xlu0 %367, %v190
          %v369 = vpop.permute.xlu0 %368
          %vm371 = vcmask 130048
          %v373 = vsel %vm371, %v357, 0
          %v376 = vsel %vm371, %v358, 0
          %378 = vmatprep.subr.mxu0 0.0
          %379 = vmatpush1.msra.mxu0 0.0
          %380 = vmatprep.subr.mxu0 0.0
          %381 = vmatpush1.msra.mxu0 0.0
          %382 = vmatprep.subr.mxu0 0.0
          %383 = vmatpush1.msra.mxu0 0.0
          %384 = vmatprep.subr.mxu0 0.0
          %385 = vmatpush1.msra.mxu0 0.0
          %386 = vmatprep.subr.mxu0 0.0
          %387 = vmatpush1.msra.mxu0 0.0
          %388 = vmatprep.subr.mxu0 0.0
          %389 = vmatpush1.msra.mxu0 0.0
          %390 = vmatprep.subr.mxu0 0.0
          %391 = vmatpush1.msra.mxu0 0.0
          %392 = vmatprep.subr.mxu0 0.0
          %393 = vmatpush1.msra.mxu0 0.0
          %394 = vmatprep.subr.mxu0 0.0
          %395 = vmatpush1.msra.mxu0 0.0
          %396 = vmatprep.subr.mxu0 0.0
          %397 = vmatpush1.msra.mxu0 0.0
          %398 = vmatprep.subr.mxu0 0.0
          %399 = vmatpush1.msra.mxu0 0.0
          %400 = vmatprep.subr.mxu0 0.0
          %401 = vmatpush1.msra.mxu0 0.0
          %402 = vmatprep.subr.mxu0 0.0
          %403 = vmatpush1.msra.mxu0 0.0
          %404 = vmatprep.subr.mxu0 0.0
          %405 = vmatpush1.msra.mxu0 0.0
          %406 = vmatprep.subr.mxu0 0.0
          %407 = vmatpush1.msra.mxu0 %v360
          %408 = vmatprep.subr.mxu0 0.0
          %409 = vmatpush1.msra.mxu0 %v359
          %410 = vmatprep.subr.mxu0 0.0
          %411 = vmatpush2.msra.mxu0 0.0
          %412 = vmatprep.subr.mxu0 0.0
          %413 = vmatpush2.msra.mxu0 0.0
          %414 = vmatprep.subr.mxu0 0.0
          %415 = vmatpush2.msra.mxu0 0.0
          %416 = vmatprep.subr.mxu0 0.0
          %417 = vmatpush2.msra.mxu0 0.0
          %418 = vmatprep.subr.mxu0 0.0
          %419 = vmatpush2.msra.mxu0 0.0
          %420 = vmatprep.subr.mxu0 0.0
          %421 = vmatpush2.msra.mxu0 0.0
          %422 = vmatprep.subr.mxu0 0.0
          %423 = vmatpush2.msra.mxu0 0.0
          %424 = vmatprep.subr.mxu0 0.0
          %425 = vmatpush2.msra.mxu0 0.0
          %426 = vmatprep.subr.mxu0 0.0
          %427 = vmatpush2.msra.mxu0 0.0
          %428 = vmatprep.subr.mxu0 0.0
          %429 = vmatpush2.msra.mxu0 0.0
          %430 = vmatprep.subr.mxu0 0.0
          %431 = vmatpush2.msra.mxu0 0.0
          %432 = vmatprep.subr.mxu0 0.0
          %433 = vmatpush2.msra.mxu0 0.0
          %434 = vmatprep.subr.mxu0 0.0
          %435 = vmatpush2.msra.mxu0 0.0
          %436 = vmatprep.subr.mxu0 0.0
          %437 = vmatpush2.msra.mxu0 0.0
          %438 = vmatprep.subr.mxu0 0.0
          %439 = vmatpush2.msra.mxu0 0.0
          %440 = vmatprep.subr.mxu0 0.0
          %441 = vmatpush2.msra.mxu0 0.0
          %442 = vmatprep.mubr.f32.mxu0 0.0
          %443 = vmatmul.mubr.f32.gmra.mxu0 %v373
          %v444 = vpop.f32.mrf.mxu0
          %v445 = vadd.f32 %v364, %v444
          %v446 = vpop.f32.mrf.mxu0
          %447 = vmatprep.mubr.f32.mxu0 0.0
          %448 = vmatmul.mubr.f32.gmra.mxu0 %v376
          %v449 = vpop.f32.mrf.mxu0
          %v450 = vadd.f32 %v369, %v449
          %v451 = vpop.f32.mrf.mxu0
          %452 = vdwg.mxu0
          %v453 = vmax.f32 %v445, 0.0
          %v454 = vmax.f32 %v450, 0.0
          %v455 = vld [vmem:[#allocation2] sm:$0xff]
          %v456 = vld [vmem:[#allocation2 + $0x8] sm:$0xff]
          %v457 = vmul.f32 %v455, 0.125
          %v458 = vmul.f32 %v456, 0.125
          %v459 = vld [vmem:[#allocation3] sm:$0xff]
          %v460 = vld [vmem:[#allocation3 + $0x8] sm:$0xff]
          %v461 = vmul.f32 %v459, 0.125
          %v462 = vmul.f32 %v460, 0.125
          %v463 = vmul.f32 %v457, %v457
          %v464 = vmul.f32 %v458, %v458
          %v465 = vsub.f32 %v461, %v463
          %v466 = vsub.f32 %v462, %v464
          %v467 = vadd.f32 %v465, 1e-05
          %v468 = vadd.f32 %v466, 1e-05
          %v469 = vrsqrt.pop %v467
          %v470 = vrsqrt.pop %v468
          %v471 = vmul.f32 %v192, %v469
          %v472 = vmul.f32 %v193, %v470
          %v473 = vmul.f32 %v457, %v471
          %v474 = vmul.f32 %v458, %v472
          %v475 = vsub.f32 %v195, %v473
          %v476 = vsub.f32 %v196, %v474
          %s477 = scalar_lea.vmem %s1, 16
          %v478 = vld [vmem:[%s477] sm:$0xff]
          %v479 = vld [vmem:[%s477 + $0x8] sm:$0xff]
          %v481 = vsel %vm371, %v478, 0
          %v484 = vsel %vm371, %v479, 0
          %486 = vmatprep.subr.mxu0 0.0
          %487 = vmatpush1.msra.mxu0 0.0
          %488 = vmatprep.subr.mxu0 0.0
          %489 = vmatpush1.msra.mxu0 0.0
          %490 = vmatprep.subr.mxu0 0.0
          %491 = vmatpush1.msra.mxu0 0.0
          %492 = vmatprep.subr.mxu0 0.0
          %493 = vmatpush1.msra.mxu0 0.0
          %494 = vmatprep.subr.mxu0 0.0
          %495 = vmatpush1.msra.mxu0 0.0
          %496 = vmatprep.subr.mxu0 0.0
          %497 = vmatpush1.msra.mxu0 0.0
          %498 = vmatprep.subr.mxu0 0.0
          %499 = vmatpush1.msra.mxu0 0.0
          %500 = vmatprep.subr.mxu0 0.0
          %501 = vmatpush1.msra.mxu0 0.0
          %502 = vmatprep.subr.mxu0 0.0
          %503 = vmatpush1.msra.mxu0 0.0
          %504 = vmatprep.subr.mxu0 0.0
          %505 = vmatpush1.msra.mxu0 0.0
          %506 = vmatprep.subr.mxu0 0.0
          %507 = vmatpush1.msra.mxu0 0.0
          %508 = vmatprep.subr.mxu0 0.0
          %509 = vmatpush1.msra.mxu0 0.0
          %510 = vmatprep.subr.mxu0 0.0
          %511 = vmatpush1.msra.mxu0 0.0
          %512 = vmatprep.subr.mxu0 0.0
          %513 = vmatpush1.msra.mxu0 0.0
          %514 = vmatprep.subr.mxu0 0.0
          %515 = vmatpush1.msra.mxu0 %v476
          %516 = vmatprep.subr.mxu0 0.0
          %517 = vmatpush1.msra.mxu0 %v475
          %518 = vmatprep.subr.mxu0 0.0
          %519 = vmatpush2.msra.mxu0 0.0
          %520 = vmatprep.subr.mxu0 0.0
          %521 = vmatpush2.msra.mxu0 0.0
          %522 = vmatprep.subr.mxu0 0.0
          %523 = vmatpush2.msra.mxu0 0.0
          %524 = vmatprep.subr.mxu0 0.0
          %525 = vmatpush2.msra.mxu0 0.0
          %526 = vmatprep.subr.mxu0 0.0
          %527 = vmatpush2.msra.mxu0 0.0
          %528 = vmatprep.subr.mxu0 0.0
          %529 = vmatpush2.msra.mxu0 0.0
          %530 = vmatprep.subr.mxu0 0.0
          %531 = vmatpush2.msra.mxu0 0.0
          %532 = vmatprep.subr.mxu0 0.0
          %533 = vmatpush2.msra.mxu0 0.0
          %534 = vmatprep.subr.mxu0 0.0
          %535 = vmatpush2.msra.mxu0 0.0
          %536 = vmatprep.subr.mxu0 0.0
          %537 = vmatpush2.msra.mxu0 0.0
          %538 = vmatprep.subr.mxu0 0.0
          %539 = vmatpush2.msra.mxu0 0.0
          %540 = vmatprep.subr.mxu0 0.0
          %541 = vmatpush2.msra.mxu0 0.0
          %542 = vmatprep.subr.mxu0 0.0
          %543 = vmatpush2.msra.mxu0 0.0
          %544 = vmatprep.subr.mxu0 0.0
          %545 = vmatpush2.msra.mxu0 0.0
          %546 = vmatprep.subr.mxu0 0.0
          %547 = vmatpush2.msra.mxu0 0.0
          %548 = vmatprep.subr.mxu0 0.0
          %549 = vmatpush2.msra.mxu0 0.0
          %550 = vmatprep.mubr.f32.mxu0 0.0
          %551 = vmatmul.mubr.f32.gmra.mxu0 %v481
          %v552 = vpop.f32.mrf.mxu0
          %v553 = vadd.f32 %v198, %v552
          %v554 = vpop.f32.mrf.mxu0
          %555 = vmatprep.mubr.f32.mxu0 0.0
          %556 = vmatmul.mubr.f32.gmra.mxu0 %v484
          %v557 = vpop.f32.mrf.mxu0
          %v558 = vadd.f32 %v199, %v557
          %v559 = vpop.f32.mrf.mxu0
          %560 = vdwg.mxu0
          %562 = vset.pattern.permute.xlu0 0
          %563 = vperm.xlu0 %562, %v471
          %v564 = vpop.permute.xlu0 %563
          %567 = vset.pattern.permute.xlu0 0
          %568 = vperm.xlu0 %567, %v472
          %v569 = vpop.permute.xlu0 %568
          %v571 = vmul.f32 %v453, %v564
          %v572 = vmul.f32 %v454, %v569
          %574 = vset.pattern.permute.xlu0 0
          %575 = vperm.xlu0 %574, %v553
          %v576 = vpop.permute.xlu0 %575
          %579 = vset.pattern.permute.xlu0 0
          %580 = vperm.xlu0 %579, %v558
          %v581 = vpop.permute.xlu0 %580
          %583 = vmatprep.subr.mxu0 0.0
          %584 = vmatpush1.msra.mxu0 0.0
          %585 = vmatprep.subr.mxu0 0.0
          %586 = vmatpush1.msra.mxu0 0.0
          %587 = vmatprep.subr.mxu0 0.0
          %588 = vmatpush1.msra.mxu0 0.0
          %589 = vmatprep.subr.mxu0 0.0
          %590 = vmatpush1.msra.mxu0 0.0
          %591 = vmatprep.subr.mxu0 0.0
          %592 = vmatpush1.msra.mxu0 0.0
          %593 = vmatprep.subr.mxu0 0.0
          %594 = vmatpush1.msra.mxu0 0.0
          %595 = vmatprep.subr.mxu0 0.0
          %596 = vmatpush1.msra.mxu0 0.0
          %597 = vmatprep.subr.mxu0 0.0
          %598 = vmatpush1.msra.mxu0 0.0
          %599 = vmatprep.subr.mxu0 0.0
          %600 = vmatpush1.msra.mxu0 0.0
          %601 = vmatprep.subr.mxu0 0.0
          %602 = vmatpush1.msra.mxu0 0.0
          %603 = vmatprep.subr.mxu0 0.0
          %604 = vmatpush1.msra.mxu0 0.0
          %605 = vmatprep.subr.mxu0 0.0
          %606 = vmatpush1.msra.mxu0 0.0
          %607 = vmatprep.subr.mxu0 0.0
          %608 = vmatpush1.msra.mxu0 0.0
          %609 = vmatprep.subr.mxu0 0.0
          %610 = vmatpush1.msra.mxu0 0.0
          %611 = vmatprep.subr.mxu0 0.0
          %612 = vmatpush1.msra.mxu0 %v572
          %613 = vmatprep.subr.mxu0 0.0
          %614 = vmatpush1.msra.mxu0 %v571
          %615 = vmatprep.subr.mxu0 0.0
          %616 = vmatpush2.msra.mxu0 0.0
          %617 = vmatprep.subr.mxu0 0.0
          %618 = vmatpush2.msra.mxu0 0.0
          %619 = vmatprep.subr.mxu0 0.0
          %620 = vmatpush2.msra.mxu0 0.0
          %621 = vmatprep.subr.mxu0 0.0
          %622 = vmatpush2.msra.mxu0 0.0
          %623 = vmatprep.subr.mxu0 0.0
          %624 = vmatpush2.msra.mxu0 0.0
          %625 = vmatprep.subr.mxu0 0.0
          %626 = vmatpush2.msra.mxu0 0.0
          %627 = vmatprep.subr.mxu0 0.0
          %628 = vmatpush2.msra.mxu0 0.0
          %629 = vmatprep.subr.mxu0 0.0
          %630 = vmatpush2.msra.mxu0 0.0
          %631 = vmatprep.subr.mxu0 0.0
          %632 = vmatpush2.msra.mxu0 0.0
          %633 = vmatprep.subr.mxu0 0.0
          %634 = vmatpush2.msra.mxu0 0.0
          %635 = vmatprep.subr.mxu0 0.0
          %636 = vmatpush2.msra.mxu0 0.0
          %637 = vmatprep.subr.mxu0 0.0
          %638 = vmatpush2.msra.mxu0 0.0
          %639 = vmatprep.subr.mxu0 0.0
          %640 = vmatpush2.msra.mxu0 0.0
          %641 = vmatprep.subr.mxu0 0.0
          %642 = vmatpush2.msra.mxu0 0.0
          %643 = vmatprep.subr.mxu0 0.0
          %644 = vmatpush2.msra.mxu0 0.0
          %645 = vmatprep.subr.mxu0 0.0
          %646 = vmatpush2.msra.mxu0 0.0
          %647 = vmatprep.mubr.f32.mxu0 0.0
          %648 = vmatmul.mubr.f32.gmra.mxu0 %v481
          %v649 = vpop.f32.mrf.mxu0
          %v650 = vadd.f32 %v576, %v649
          %v651 = vpop.f32.mrf.mxu0
          %652 = vmatprep.mubr.f32.mxu0 0.0
          %653 = vmatmul.mubr.f32.gmra.mxu0 %v484
          %v654 = vpop.f32.mrf.mxu0
          %v655 = vadd.f32 %v581, %v654
          %v656 = vpop.f32.mrf.mxu0
          %657 = vdwg.mxu0
          %v658 = vmax.f32 %v650, 0.0
          %v659 = vmax.f32 %v655, 0.0
          %v660 = vld [vmem:[#allocation4] sm:$0xff]
          %v661 = vld [vmem:[#allocation4 + $0x8] sm:$0xff]
          %vm662 = vcmask 64512
          %v663 = vsel %vm662, %v658, 0.0
          %664 = vadd.xlane.f32.xlu0 %v663
          %v665 = vpop.xlane.xlu0 %664
          %v666 = vsel %vm662, %v659, 0.0
          %667 = vadd.xlane.f32.xlu0 %v666
          %v668 = vpop.xlane.xlu0 %667
          %v669 = vadd.f32 %v660, %v665
          %v670 = vadd.f32 %v661, %v668
          %vm671 = vcmask 7168
          %672 = vst.msk [vmem:[#allocation4] sm:$0xff] %vm671, %v669
          %673 = vst.msk [vmem:[#allocation4 + $0x8] sm:$0xff] %vm671, %v670
          %v674 = vld [vmem:[#allocation5] sm:$0xff]
          %v675 = vld [vmem:[#allocation5 + $0x8] sm:$0xff]
          %v676 = vmul.f32 %v658, %v658
          %v677 = vmul.f32 %v659, %v659
          %v678 = vsel %vm662, %v676, 0.0
          %679 = vadd.xlane.f32.xlu0 %v678
          %v680 = vpop.xlane.xlu0 %679
          %v681 = vsel %vm662, %v677, 0.0
          %682 = vadd.xlane.f32.xlu0 %v681
          %v683 = vpop.xlane.xlu0 %682
          %v684 = vadd.f32 %v674, %v680
          %v685 = vadd.f32 %v675, %v683
          %686 = vst.msk [vmem:[#allocation5] sm:$0xff] %vm671, %v684
          %687 = vst.msk [vmem:[#allocation5 + $0x8] sm:$0xff] %vm671, %v685
        $region44: #{tpu_custom_call.1} parent=31 // pred_fallthru
          _
        %p688 = scmp.eq.s32.totalorder %s21, 2
        // Predicated region
        $region45: #{tpu_custom_call.1} parent=31 // pred_check
          %p689 = pneg %p688
        $region46: #{tpu_custom_call.1} parent=31 // pred_check_branch
          %691 = sbr.rel (%p689) target = $region48
        $region47: #{tpu_custom_call.1} parent=31 // pred_region
          %v692 = vld [vmem:[%s1] sm:$0xff]
          %v693 = vld [vmem:[%s1 + $0x8] sm:$0xff]
          %v694 = vld [vmem:[%s184] sm:$0xff]
          %v695 = vld [vmem:[%s184 + $0x8] sm:$0xff]
          %697 = vset.pattern.permute.xlu0 0
          %698 = vperm.xlu0 %697, %v189
          %v699 = vpop.permute.xlu0 %698
          %702 = vset.pattern.permute.xlu0 0
          %703 = vperm.xlu0 %702, %v190
          %v704 = vpop.permute.xlu0 %703
          %vm706 = vcmask 130048
          %v708 = vsel %vm706, %v692, 0
          %v711 = vsel %vm706, %v693, 0
          %713 = vmatprep.subr.mxu0 0.0
          %714 = vmatpush1.msra.mxu0 0.0
          %715 = vmatprep.subr.mxu0 0.0
          %716 = vmatpush1.msra.mxu0 0.0
          %717 = vmatprep.subr.mxu0 0.0
          %718 = vmatpush1.msra.mxu0 0.0
          %719 = vmatprep.subr.mxu0 0.0
          %720 = vmatpush1.msra.mxu0 0.0
          %721 = vmatprep.subr.mxu0 0.0
          %722 = vmatpush1.msra.mxu0 0.0
          %723 = vmatprep.subr.mxu0 0.0
          %724 = vmatpush1.msra.mxu0 0.0
          %725 = vmatprep.subr.mxu0 0.0
          %726 = vmatpush1.msra.mxu0 0.0
          %727 = vmatprep.subr.mxu0 0.0
          %728 = vmatpush1.msra.mxu0 0.0
          %729 = vmatprep.subr.mxu0 0.0
          %730 = vmatpush1.msra.mxu0 0.0
          %731 = vmatprep.subr.mxu0 0.0
          %732 = vmatpush1.msra.mxu0 0.0
          %733 = vmatprep.subr.mxu0 0.0
          %734 = vmatpush1.msra.mxu0 0.0
          %735 = vmatprep.subr.mxu0 0.0
          %736 = vmatpush1.msra.mxu0 0.0
          %737 = vmatprep.subr.mxu0 0.0
          %738 = vmatpush1.msra.mxu0 0.0
          %739 = vmatprep.subr.mxu0 0.0
          %740 = vmatpush1.msra.mxu0 0.0
          %741 = vmatprep.subr.mxu0 0.0
          %742 = vmatpush1.msra.mxu0 %v695
          %743 = vmatprep.subr.mxu0 0.0
          %744 = vmatpush1.msra.mxu0 %v694
          %745 = vmatprep.subr.mxu0 0.0
          %746 = vmatpush2.msra.mxu0 0.0
          %747 = vmatprep.subr.mxu0 0.0
          %748 = vmatpush2.msra.mxu0 0.0
          %749 = vmatprep.subr.mxu0 0.0
          %750 = vmatpush2.msra.mxu0 0.0
          %751 = vmatprep.subr.mxu0 0.0
          %752 = vmatpush2.msra.mxu0 0.0
          %753 = vmatprep.subr.mxu0 0.0
          %754 = vmatpush2.msra.mxu0 0.0
          %755 = vmatprep.subr.mxu0 0.0
          %756 = vmatpush2.msra.mxu0 0.0
          %757 = vmatprep.subr.mxu0 0.0
          %758 = vmatpush2.msra.mxu0 0.0
          %759 = vmatprep.subr.mxu0 0.0
          %760 = vmatpush2.msra.mxu0 0.0
          %761 = vmatprep.subr.mxu0 0.0
          %762 = vmatpush2.msra.mxu0 0.0
          %763 = vmatprep.subr.mxu0 0.0
          %764 = vmatpush2.msra.mxu0 0.0
          %765 = vmatprep.subr.mxu0 0.0
          %766 = vmatpush2.msra.mxu0 0.0
          %767 = vmatprep.subr.mxu0 0.0
          %768 = vmatpush2.msra.mxu0 0.0
          %769 = vmatprep.subr.mxu0 0.0
          %770 = vmatpush2.msra.mxu0 0.0
          %771 = vmatprep.subr.mxu0 0.0
          %772 = vmatpush2.msra.mxu0 0.0
          %773 = vmatprep.subr.mxu0 0.0
          %774 = vmatpush2.msra.mxu0 0.0
          %775 = vmatprep.subr.mxu0 0.0
          %776 = vmatpush2.msra.mxu0 0.0
          %777 = vmatprep.mubr.f32.mxu0 0.0
          %778 = vmatmul.mubr.f32.gmra.mxu0 %v708
          %v779 = vpop.f32.mrf.mxu0
          %v780 = vadd.f32 %v699, %v779
          %v781 = vpop.f32.mrf.mxu0
          %782 = vmatprep.mubr.f32.mxu0 0.0
          %783 = vmatmul.mubr.f32.gmra.mxu0 %v711
          %v784 = vpop.f32.mrf.mxu0
          %v785 = vadd.f32 %v704, %v784
          %v786 = vpop.f32.mrf.mxu0
          %787 = vdwg.mxu0
          %v788 = vmax.f32 %v780, 0.0
          %v789 = vmax.f32 %v785, 0.0
          %v790 = vld [vmem:[#allocation2] sm:$0xff]
          %v791 = vld [vmem:[#allocation2 + $0x8] sm:$0xff]
          %v792 = vmul.f32 %v790, 0.125
          %v793 = vmul.f32 %v791, 0.125
          %v794 = vld [vmem:[#allocation3] sm:$0xff]
          %v795 = vld [vmem:[#allocation3 + $0x8] sm:$0xff]
          %v796 = vmul.f32 %v794, 0.125
          %v797 = vmul.f32 %v795, 0.125
          %v798 = vmul.f32 %v792, %v792
          %v799 = vmul.f32 %v793, %v793
          %v800 = vsub.f32 %v796, %v798
          %v801 = vsub.f32 %v797, %v799
          %v802 = vadd.f32 %v800, 1e-05
          %v803 = vadd.f32 %v801, 1e-05
          %v804 = vrsqrt.pop %v802
          %v805 = vrsqrt.pop %v803
          %v806 = vmul.f32 %v192, %v804
          %v807 = vmul.f32 %v193, %v805
          %v808 = vmul.f32 %v792, %v806
          %v809 = vmul.f32 %v793, %v807
          %v810 = vsub.f32 %v195, %v808
          %v811 = vsub.f32 %v196, %v809
          %s812 = scalar_lea.vmem %s1, 16
          %v813 = vld [vmem:[%s812] sm:$0xff]
          %v814 = vld [vmem:[%s812 + $0x8] sm:$0xff]
          %v816 = vsel %vm706, %v813, 0
          %v819 = vsel %vm706, %v814, 0
          %821 = vmatprep.subr.mxu0 0.0
          %822 = vmatpush1.msra.mxu0 0.0
          %823 = vmatprep.subr.mxu0 0.0
          %824 = vmatpush1.msra.mxu0 0.0
          %825 = vmatprep.subr.mxu0 0.0
          %826 = vmatpush1.msra.mxu0 0.0
          %827 = vmatprep.subr.mxu0 0.0
          %828 = vmatpush1.msra.mxu0 0.0
          %829 = vmatprep.subr.mxu0 0.0
          %830 = vmatpush1.msra.mxu0 0.0
          %831 = vmatprep.subr.mxu0 0.0
          %832 = vmatpush1.msra.mxu0 0.0
          %833 = vmatprep.subr.mxu0 0.0
          %834 = vmatpush1.msra.mxu0 0.0
          %835 = vmatprep.subr.mxu0 0.0
          %836 = vmatpush1.msra.mxu0 0.0
          %837 = vmatprep.subr.mxu0 0.0
          %838 = vmatpush1.msra.mxu0 0.0
          %839 = vmatprep.subr.mxu0 0.0
          %840 = vmatpush1.msra.mxu0 0.0
          %841 = vmatprep.subr.mxu0 0.0
          %842 = vmatpush1.msra.mxu0 0.0
          %843 = vmatprep.subr.mxu0 0.0
          %844 = vmatpush1.msra.mxu0 0.0
          %845 = vmatprep.subr.mxu0 0.0
          %846 = vmatpush1.msra.mxu0 0.0
          %847 = vmatprep.subr.mxu0 0.0
          %848 = vmatpush1.msra.mxu0 0.0
          %849 = vmatprep.subr.mxu0 0.0
          %850 = vmatpush1.msra.mxu0 %v811
          %851 = vmatprep.subr.mxu0 0.0
          %852 = vmatpush1.msra.mxu0 %v810
          %853 = vmatprep.subr.mxu0 0.0
          %854 = vmatpush2.msra.mxu0 0.0
          %855 = vmatprep.subr.mxu0 0.0
          %856 = vmatpush2.msra.mxu0 0.0
          %857 = vmatprep.subr.mxu0 0.0
          %858 = vmatpush2.msra.mxu0 0.0
          %859 = vmatprep.subr.mxu0 0.0
          %860 = vmatpush2.msra.mxu0 0.0
          %861 = vmatprep.subr.mxu0 0.0
          %862 = vmatpush2.msra.mxu0 0.0
          %863 = vmatprep.subr.mxu0 0.0
          %864 = vmatpush2.msra.mxu0 0.0
          %865 = vmatprep.subr.mxu0 0.0
          %866 = vmatpush2.msra.mxu0 0.0
          %867 = vmatprep.subr.mxu0 0.0
          %868 = vmatpush2.msra.mxu0 0.0
          %869 = vmatprep.subr.mxu0 0.0
          %870 = vmatpush2.msra.mxu0 0.0
          %871 = vmatprep.subr.mxu0 0.0
          %872 = vmatpush2.msra.mxu0 0.0
          %873 = vmatprep.subr.mxu0 0.0
          %874 = vmatpush2.msra.mxu0 0.0
          %875 = vmatprep.subr.mxu0 0.0
          %876 = vmatpush2.msra.mxu0 0.0
          %877 = vmatprep.subr.mxu0 0.0
          %878 = vmatpush2.msra.mxu0 0.0
          %879 = vmatprep.subr.mxu0 0.0
          %880 = vmatpush2.msra.mxu0 0.0
          %881 = vmatprep.subr.mxu0 0.0
          %882 = vmatpush2.msra.mxu0 0.0
          %883 = vmatprep.subr.mxu0 0.0
          %884 = vmatpush2.msra.mxu0 0.0
          %885 = vmatprep.mubr.f32.mxu0 0.0
          %886 = vmatmul.mubr.f32.gmra.mxu0 %v816
          %v887 = vpop.f32.mrf.mxu0
          %v888 = vadd.f32 %v198, %v887
          %v889 = vpop.f32.mrf.mxu0
          %890 = vmatprep.mubr.f32.mxu0 0.0
          %891 = vmatmul.mubr.f32.gmra.mxu0 %v819
          %v892 = vpop.f32.mrf.mxu0
          %v893 = vadd.f32 %v199, %v892
          %v894 = vpop.f32.mrf.mxu0
          %895 = vdwg.mxu0
          %897 = vset.pattern.permute.xlu0 0
          %898 = vperm.xlu0 %897, %v806
          %v899 = vpop.permute.xlu0 %898
          %902 = vset.pattern.permute.xlu0 0
          %903 = vperm.xlu0 %902, %v807
          %v904 = vpop.permute.xlu0 %903
          %v906 = vmul.f32 %v788, %v899
          %v907 = vmul.f32 %v789, %v904
          %909 = vset.pattern.permute.xlu0 0
          %910 = vperm.xlu0 %909, %v888
          %v911 = vpop.permute.xlu0 %910
          %914 = vset.pattern.permute.xlu0 0
          %915 = vperm.xlu0 %914, %v893
          %v916 = vpop.permute.xlu0 %915
          %918 = vmatprep.subr.mxu0 0.0
          %919 = vmatpush1.msra.mxu0 0.0
          %920 = vmatprep.subr.mxu0 0.0
          %921 = vmatpush1.msra.mxu0 0.0
          %922 = vmatprep.subr.mxu0 0.0
          %923 = vmatpush1.msra.mxu0 0.0
          %924 = vmatprep.subr.mxu0 0.0
          %925 = vmatpush1.msra.mxu0 0.0
          %926 = vmatprep.subr.mxu0 0.0
          %927 = vmatpush1.msra.mxu0 0.0
          %928 = vmatprep.subr.mxu0 0.0
          %929 = vmatpush1.msra.mxu0 0.0
          %930 = vmatprep.subr.mxu0 0.0
          %931 = vmatpush1.msra.mxu0 0.0
          %932 = vmatprep.subr.mxu0 0.0
          %933 = vmatpush1.msra.mxu0 0.0
          %934 = vmatprep.subr.mxu0 0.0
          %935 = vmatpush1.msra.mxu0 0.0
          %936 = vmatprep.subr.mxu0 0.0
          %937 = vmatpush1.msra.mxu0 0.0
          %938 = vmatprep.subr.mxu0 0.0
          %939 = vmatpush1.msra.mxu0 0.0
          %940 = vmatprep.subr.mxu0 0.0
          %941 = vmatpush1.msra.mxu0 0.0
          %942 = vmatprep.subr.mxu0 0.0
          %943 = vmatpush1.msra.mxu0 0.0
          %944 = vmatprep.subr.mxu0 0.0
          %945 = vmatpush1.msra.mxu0 0.0
          %946 = vmatprep.subr.mxu0 0.0
          %947 = vmatpush1.msra.mxu0 %v907
          %948 = vmatprep.subr.mxu0 0.0
          %949 = vmatpush1.msra.mxu0 %v906
          %950 = vmatprep.subr.mxu0 0.0
          %951 = vmatpush2.msra.mxu0 0.0
          %952 = vmatprep.subr.mxu0 0.0
          %953 = vmatpush2.msra.mxu0 0.0
          %954 = vmatprep.subr.mxu0 0.0
          %955 = vmatpush2.msra.mxu0 0.0
          %956 = vmatprep.subr.mxu0 0.0
          %957 = vmatpush2.msra.mxu0 0.0
          %958 = vmatprep.subr.mxu0 0.0
          %959 = vmatpush2.msra.mxu0 0.0
          %960 = vmatprep.subr.mxu0 0.0
          %961 = vmatpush2.msra.mxu0 0.0
          %962 = vmatprep.subr.mxu0 0.0
          %963 = vmatpush2.msra.mxu0 0.0
          %964 = vmatprep.subr.mxu0 0.0
          %965 = vmatpush2.msra.mxu0 0.0
          %966 = vmatprep.subr.mxu0 0.0
          %967 = vmatpush2.msra.mxu0 0.0
          %968 = vmatprep.subr.mxu0 0.0
          %969 = vmatpush2.msra.mxu0 0.0
          %970 = vmatprep.subr.mxu0 0.0
          %971 = vmatpush2.msra.mxu0 0.0
          %972 = vmatprep.subr.mxu0 0.0
          %973 = vmatpush2.msra.mxu0 0.0
          %974 = vmatprep.subr.mxu0 0.0
          %975 = vmatpush2.msra.mxu0 0.0
          %976 = vmatprep.subr.mxu0 0.0
          %977 = vmatpush2.msra.mxu0 0.0
          %978 = vmatprep.subr.mxu0 0.0
          %979 = vmatpush2.msra.mxu0 0.0
          %980 = vmatprep.subr.mxu0 0.0
          %981 = vmatpush2.msra.mxu0 0.0
          %982 = vmatprep.mubr.f32.mxu0 0.0
          %983 = vmatmul.mubr.f32.gmra.mxu0 %v816
          %v984 = vpop.f32.mrf.mxu0
          %v985 = vadd.f32 %v911, %v984
          %v986 = vpop.f32.mrf.mxu0
          %987 = vmatprep.mubr.f32.mxu0 0.0
          %988 = vmatmul.mubr.f32.gmra.mxu0 %v819
          %v989 = vpop.f32.mrf.mxu0
          %v990 = vadd.f32 %v916, %v989
          %v991 = vpop.f32.mrf.mxu0
          %992 = vdwg.mxu0
          %v993 = vmax.f32 %v985, 0.0
          %v994 = vmax.f32 %v990, 0.0
          %v995 = vld [vmem:[#allocation4] sm:$0xff]
          %v996 = vld [vmem:[#allocation4 + $0x8] sm:$0xff]
          %v997 = vmul.f32 %v995, 0.125
          %v998 = vmul.f32 %v996, 0.125
          %v999 = vld [vmem:[#allocation5] sm:$0xff]
          %v1000 = vld [vmem:[#allocation5 + $0x8] sm:$0xff]
          %v1001 = vmul.f32 %v999, 0.125
          %v1002 = vmul.f32 %v1000, 0.125
          %v1003 = vmul.f32 %v997, %v997
          %v1004 = vmul.f32 %v998, %v998
          %v1005 = vsub.f32 %v1001, %v1003
          %v1006 = vsub.f32 %v1002, %v1004
          %v1007 = vadd.f32 %v1005, 1e-05
          %v1008 = vadd.f32 %v1006, 1e-05
          %v1009 = vrsqrt.pop %v1007
          %v1010 = vrsqrt.pop %v1008
          %v1011 = vmul.f32 %v201, %v1009
          %v1012 = vmul.f32 %v202, %v1010
          %v1013 = vmul.f32 %v997, %v1011
          %v1014 = vmul.f32 %v998, %v1012
          %v1015 = vsub.f32 %v204, %v1013
          %v1016 = vsub.f32 %v205, %v1014
          %s1017 = scalar_lea.vmem %s1, 32
          %v1018 = vld [vmem:[%s1017] sm:$0xff]
          %v1019 = vld [vmem:[%s1017 + $0x8] sm:$0xff]
          %v1021 = vsel %vm706, %v1018, 0
          %v1024 = vsel %vm706, %v1019, 0
          %1026 = vmatprep.subr.mxu0 0.0
          %1027 = vmatpush1.msra.mxu0 0.0
          %1028 = vmatprep.subr.mxu0 0.0
          %1029 = vmatpush1.msra.mxu0 0.0
          %1030 = vmatprep.subr.mxu0 0.0
          %1031 = vmatpush1.msra.mxu0 0.0
          %1032 = vmatprep.subr.mxu0 0.0
          %1033 = vmatpush1.msra.mxu0 0.0
          %1034 = vmatprep.subr.mxu0 0.0
          %1035 = vmatpush1.msra.mxu0 0.0
          %1036 = vmatprep.subr.mxu0 0.0
          %1037 = vmatpush1.msra.mxu0 0.0
          %1038 = vmatprep.subr.mxu0 0.0
          %1039 = vmatpush1.msra.mxu0 0.0
          %1040 = vmatprep.subr.mxu0 0.0
          %1041 = vmatpush1.msra.mxu0 0.0
          %1042 = vmatprep.subr.mxu0 0.0
          %1043 = vmatpush1.msra.mxu0 0.0
          %1044 = vmatprep.subr.mxu0 0.0
          %1045 = vmatpush1.msra.mxu0 0.0
          %1046 = vmatprep.subr.mxu0 0.0
          %1047 = vmatpush1.msra.mxu0 0.0
          %1048 = vmatprep.subr.mxu0 0.0
          %1049 = vmatpush1.msra.mxu0 0.0
          %1050 = vmatprep.subr.mxu0 0.0
          %1051 = vmatpush1.msra.mxu0 0.0
          %1052 = vmatprep.subr.mxu0 0.0
          %1053 = vmatpush1.msra.mxu0 0.0
          %1054 = vmatprep.subr.mxu0 0.0
          %1055 = vmatpush1.msra.mxu0 %v1016
          %1056 = vmatprep.subr.mxu0 0.0
          %1057 = vmatpush1.msra.mxu0 %v1015
          %1058 = vmatprep.subr.mxu0 0.0
          %1059 = vmatpush2.msra.mxu0 0.0
          %1060 = vmatprep.subr.mxu0 0.0
          %1061 = vmatpush2.msra.mxu0 0.0
          %1062 = vmatprep.subr.mxu0 0.0
          %1063 = vmatpush2.msra.mxu0 0.0
          %1064 = vmatprep.subr.mxu0 0.0
          %1065 = vmatpush2.msra.mxu0 0.0
          %1066 = vmatprep.subr.mxu0 0.0
          %1067 = vmatpush2.msra.mxu0 0.0
          %1068 = vmatprep.subr.mxu0 0.0
          %1069 = vmatpush2.msra.mxu0 0.0
          %1070 = vmatprep.subr.mxu0 0.0
          %1071 = vmatpush2.msra.mxu0 0.0
          %1072 = vmatprep.subr.mxu0 0.0
          %1073 = vmatpush2.msra.mxu0 0.0
          %1074 = vmatprep.subr.mxu0 0.0
          %1075 = vmatpush2.msra.mxu0 0.0
          %1076 = vmatprep.subr.mxu0 0.0
          %1077 = vmatpush2.msra.mxu0 0.0
          %1078 = vmatprep.subr.mxu0 0.0
          %1079 = vmatpush2.msra.mxu0 0.0
          %1080 = vmatprep.subr.mxu0 0.0
          %1081 = vmatpush2.msra.mxu0 0.0
          %1082 = vmatprep.subr.mxu0 0.0
          %1083 = vmatpush2.msra.mxu0 0.0
          %1084 = vmatprep.subr.mxu0 0.0
          %1085 = vmatpush2.msra.mxu0 0.0
          %1086 = vmatprep.subr.mxu0 0.0
          %1087 = vmatpush2.msra.mxu0 0.0
          %1088 = vmatprep.subr.mxu0 0.0
          %1089 = vmatpush2.msra.mxu0 0.0
          %1090 = vmatprep.mubr.f32.mxu0 0.0
          %1091 = vmatmul.mubr.f32.gmra.mxu0 %v1021
          %v1092 = vpop.f32.mrf.mxu0
          %v1093 = vadd.f32 %v207, %v1092
          %v1094 = vpop.f32.mrf.mxu0
          %1095 = vmatprep.mubr.f32.mxu0 0.0
          %1096 = vmatmul.mubr.f32.gmra.mxu0 %v1024
          %v1097 = vpop.f32.mrf.mxu0
          %v1098 = vadd.f32 %v208, %v1097
          %v1099 = vpop.f32.mrf.mxu0
          %1100 = vdwg.mxu0
          %1102 = vset.pattern.permute.xlu0 0
          %1103 = vperm.xlu0 %1102, %v1011
          %v1104 = vpop.permute.xlu0 %1103
          %1107 = vset.pattern.permute.xlu0 0
          %1108 = vperm.xlu0 %1107, %v1012
          %v1109 = vpop.permute.xlu0 %1108
          %v1111 = vmul.f32 %v993, %v1104
          %v1112 = vmul.f32 %v994, %v1109
          %1114 = vset.pattern.permute.xlu0 0
          %1115 = vperm.xlu0 %1114, %v1093
          %v1116 = vpop.permute.xlu0 %1115
          %1119 = vset.pattern.permute.xlu0 0
          %1120 = vperm.xlu0 %1119, %v1098
          %v1121 = vpop.permute.xlu0 %1120
          %1122 = vmatprep.subr.mxu0 0.0
          %1123 = vmatpush1.msra.mxu0 0.0
          %1124 = vmatprep.subr.mxu0 0.0
          %1125 = vmatpush1.msra.mxu0 0.0
          %1126 = vmatprep.subr.mxu0 0.0
          %1127 = vmatpush1.msra.mxu0 0.0
          %1128 = vmatprep.subr.mxu0 0.0
          %1129 = vmatpush1.msra.mxu0 0.0
          %1130 = vmatprep.subr.mxu0 0.0
          %1131 = vmatpush1.msra.mxu0 0.0
          %1132 = vmatprep.subr.mxu0 0.0
          %1133 = vmatpush1.msra.mxu0 0.0
          %1134 = vmatprep.subr.mxu0 0.0
          %1135 = vmatpush1.msra.mxu0 0.0
          %1136 = vmatprep.subr.mxu0 0.0
          %1137 = vmatpush1.msra.mxu0 0.0
          %1138 = vmatprep.subr.mxu0 0.0
          %1139 = vmatpush1.msra.mxu0 0.0
          %1140 = vmatprep.subr.mxu0 0.0
          %1141 = vmatpush1.msra.mxu0 0.0
          %1142 = vmatprep.subr.mxu0 0.0
          %1143 = vmatpush1.msra.mxu0 0.0
          %1144 = vmatprep.subr.mxu0 0.0
          %1145 = vmatpush1.msra.mxu0 0.0
          %1146 = vmatprep.subr.mxu0 0.0
          %1147 = vmatpush1.msra.mxu0 0.0
          %1148 = vmatprep.subr.mxu0 0.0
          %1149 = vmatpush1.msra.mxu0 0.0
          %1150 = vmatprep.subr.mxu0 0.0
          %1151 = vmatpush1.msra.mxu0 %v1112
          %1152 = vmatprep.subr.mxu0 0.0
          %1153 = vmatpush1.msra.mxu0 %v1111
          %1154 = vmatprep.subr.mxu0 0.0
          %1155 = vmatpush2.msra.mxu0 0.0
          %1156 = vmatprep.subr.mxu0 0.0
          %1157 = vmatpush2.msra.mxu0 0.0
          %1158 = vmatprep.subr.mxu0 0.0
          %1159 = vmatpush2.msra.mxu0 0.0
          %1160 = vmatprep.subr.mxu0 0.0
          %1161 = vmatpush2.msra.mxu0 0.0
          %1162 = vmatprep.subr.mxu0 0.0
          %1163 = vmatpush2.msra.mxu0 0.0
          %1164 = vmatprep.subr.mxu0 0.0
          %1165 = vmatpush2.msra.mxu0 0.0
          %1166 = vmatprep.subr.mxu0 0.0
          %1167 = vmatpush2.msra.mxu0 0.0
          %1168 = vmatprep.subr.mxu0 0.0
          %1169 = vmatpush2.msra.mxu0 0.0
          %1170 = vmatprep.subr.mxu0 0.0
          %1171 = vmatpush2.msra.mxu0 0.0
          %1172 = vmatprep.subr.mxu0 0.0
          %1173 = vmatpush2.msra.mxu0 0.0
          %1174 = vmatprep.subr.mxu0 0.0
          %1175 = vmatpush2.msra.mxu0 0.0
          %1176 = vmatprep.subr.mxu0 0.0
          %1177 = vmatpush2.msra.mxu0 0.0
          %1178 = vmatprep.subr.mxu0 0.0
          %1179 = vmatpush2.msra.mxu0 0.0
          %1180 = vmatprep.subr.mxu0 0.0
          %1181 = vmatpush2.msra.mxu0 0.0
          %1182 = vmatprep.subr.mxu0 0.0
          %1183 = vmatpush2.msra.mxu0 0.0
          %1184 = vmatprep.subr.mxu0 0.0
          %1185 = vmatpush2.msra.mxu0 0.0
          %1186 = vmatprep.mubr.f32.mxu0 0.0
          %1187 = vmatmul.mubr.f32.gmra.mxu0 %v1021
          %v1188 = vpop.f32.mrf.mxu0
          %v1189 = vadd.f32 %v1116, %v1188
          %v1190 = vpop.f32.mrf.mxu0
          %1191 = vmatprep.mubr.f32.mxu0 0.0
          %1192 = vmatmul.mubr.f32.gmra.mxu0 %v1024
          %v1193 = vpop.f32.mrf.mxu0
          %v1194 = vpop.f32.mrf.mxu0
          %1195 = vdwg.mxu0
          %vm1196 = vcmask 57344
          %1197 = vst.msk [vmem:[%s180] sm:$0x1] %vm1196, %v1189
        $region48: #{tpu_custom_call.1} parent=31 // pred_fallthru
          _
        %s1198 = sand.u32 %s113, 1
        %s1199 = scalar_lea.sflag [#allocation7], %s1198
        %s1200 = sand.u32 %s113, 1
        %s1201 = scalar_lea.vmem [#allocation6], %s1200
        // Predicated region
        $region49: #{tpu_custom_call.1} parent=31 // pred_check
          %p1202 = pneg %p123
        $region50: #{tpu_custom_call.1} parent=31 // pred_check_branch
          %1204 = sbr.rel (%p1202) target = $region52
        $region51: #{tpu_custom_call.1} parent=31 // pred_region
          %s1205 = ssub.s32 %s21, 1
          %p1206 = scmp.gt.s32.totalorder %s1205, 0
          %s1207 = scalar_select %p1206, %s1205, 0
          %s1208 = smul.u32 %s22, %s1207
          %s1210 = ssub.s32 16, 16
          %1211 = vsyncadd %s1199, %s1210
          %s1212 = smul.addr %s1208, 16
          %s1213 = scalar_lea.hbm %s3, %s1212
          %s1215 = sshll.u32 %s1201, 4
          %s1216 = int_to_ptr.vmem [resolvable:$true] %s1215
          %1218 = dma.vmem_to_hbm [thread:$0]  %s1216, 16, %s1213, %s1199
        $region52: #{tpu_custom_call.1} parent=31 // pred_fallthru
          _
      $region32: #{tpu_custom_call.1} parent=5 // pred_fallthru
        _
      %p1219 = scmp.le.s32.totalorder 2, %s12
      // Predicated region
      $region53: #{tpu_custom_call.1} parent=5 // pred_check
        %p1220 = pneg %p1219
      $region54: #{tpu_custom_call.1} parent=5 // pred_check_branch
        %1222 = sbr.rel (%p1220) target = $region56
      $region55: #{tpu_custom_call.1} parent=5 // pred_region
        %s1223 = ssub.s32 %s12, 2
        // Predicated region
        $region57: #{tpu_custom_call.1} parent=55 // pred_check
          %p1224 = pneg %p129
        $region58: #{tpu_custom_call.1} parent=55 // pred_check_branch
          %1226 = sbr.rel (%p1224) target = $region60
        $region59: #{tpu_custom_call.1} parent=55 // pred_region
          %s1227 = sand.u32 %s114, 1
          %s1228 = scalar_lea.sflag [#allocation7], %s1227
          %s1229 = sand.u32 %s114, 1
          %s1230 = scalar_lea.vmem [#allocation6], %s1229
          %1231 = dma.done %s1228, 16
        $region60: #{tpu_custom_call.1} parent=55 // pred_fallthru
          _
      $region56: #{tpu_custom_call.1} parent=5 // pred_fallthru
        _
    $region6: #{tpu_custom_call.1} parent=1 // loop_footer
      %s16 = sadd.s32 1, %s12
    $region7: #{tpu_custom_call.1} parent=1 // loop_footer_branch
      %11 = sbr.rel target = $region3
    $region8: #{tpu_custom_call.1} parent=1 // loop_exit
      _
    %1232 = vsyncpa [#allocation7], 1
    %s1233 = scalar_lea.sflag [#allocation7], 1
    %1234 = vsyncpa %s1233, 1

</llo_original>
